<compile_context>
chip_gen: v6e
topology: v6e:2x2x1
jax: 0.10.0
libtpu: 0.0.40
codegen_flags: <defaults>
</compile_context>

<pallas_src>
import functools

import jax
import jax.numpy as jnp
from jax import lax
from jax.experimental import pallas as pl
from jax.experimental.pallas import tpu as pltpu


def _tie_kernel(w_ref, x_ref, pe_ref, out_ref, *, sh, compute_dtype):
    # w_ref  : SMEM (OC*Cin*KW,) f32  learned conv weights, k = (oc*Cin + ic)*KW + kw
    # x_ref  : VMEM (Cin, TH, W)      one (n, h-tile) slab of the NCHW input, W on lanes
    # pe_ref : VMEM (1, W)            fix_encodings_base * scale_factor (lane-dense)
    # out_ref: VMEM (OC, TH, W)       conv + pool * pe, lane-dense per output channel
    Cin, TH, W = x_ref.shape
    OC = out_ref.shape[0]
    KW = w_ref.shape[0] // (OC * Cin)
    pad = (KW - 1) // 2
    ns = TH // sh

    pe = pe_ref[...]                                        # (1, W) f32
    col = lax.broadcasted_iota(jnp.int32, (1, W), 1)        # time index per lane

    # Per-tap boundary masks (zero padding of the conv); (1, W), broadcast over rows.
    masks = []
    for kw in range(KW):
        d = kw - pad                                        # out[w] needs x[w + d]
        if d > 0:
            masks.append(col < (W - d))
        elif d < 0:
            masks.append(col >= (-d))
        else:
            masks.append(None)

    def strip(r0):
        # One SH-row strip: live set = OC accumulators + 1 shifted plane (+ pe/wpe).
        accs = [jnp.zeros((sh, W), compute_dtype) for _ in range(OC)]
        for kw in range(KW):
            d = kw - pad
            for ic in range(Cin):
                xi = x_ref[ic, pl.ds(r0, sh), :]            # (SH, W) input dtype
                if d != 0:
                    xi = jnp.where(masks[kw],
                                   pltpu.roll(xi, shift=(-d) % W, axis=1), 0.0)
                xi = xi.astype(compute_dtype)
                for oc in range(OC):
                    # (w + pe) folds the ones-conv "pooling" into the learned conv:
                    # sum (w + pe) * x_shift == conv + pool * pe.
                    wpe = (w_ref[(oc * Cin + ic) * KW + kw] + pe).astype(compute_dtype)
                    accs[oc] = accs[oc] + wpe * xi
        for oc in range(OC):
            out_ref[oc, pl.ds(r0, sh), :] = accs[oc].astype(out_ref.dtype)

    if ns == 1:
        strip(0)
    else:
        def body(s, carry):
            strip(pl.multiple_of(s * sh, sh))
            return carry
        lax.fori_loop(0, ns, body, None)


def tie_layer_forward(data, w_conv, pe, *, compute_dtype=jnp.float32, out_dtype=None):
    """TIE_Layer forward (pool='Conv', TIE='sinusoidal').

    data  : (N, Cin, H, W) NCHW input.
    w_conv: (OC, Cin, 1, KW) learned conv weights (odd KW).
    pe    : (W,) = fix_encodings_base * scale_factor.
    """
    N, Cin, H, W = data.shape
    OC, Cin2, KH, KW = w_conv.shape
    assert KH == 1 and Cin2 == Cin, "TIE temporal conv expects kernel (1, KW)"
    assert KW % 2 == 1, "even KW changes the PyTorch output width; only odd KW supported"
    assert pe.shape == (W,), "encoding length (sample_len+1) must equal conv output width"
    out_dtype = jnp.float32 if out_dtype is None else out_dtype

    in_item = jnp.dtype(data.dtype).itemsize
    out_item = jnp.dtype(out_dtype).itemsize
    comp_item = jnp.dtype(compute_dtype).itemsize

    # --- VMEM budget (per generation) and H-tile selection -----------------
    try:
        vmem_cap = int(pltpu.get_tpu_info().vmem_capacity_bytes)
    except Exception:
        vmem_cap = 64 << 20                      # v7x-safe worst case
    budget = int(vmem_cap * 0.4)                 # double-buffered blocks target

    def block_bytes(th):                         # double-buffered in + out blocks + pe
        return 2 * (Cin * th * W * in_item + OC * th * W * out_item) + 2 * W * 4

    sub = 16 if data.dtype == jnp.bfloat16 else 8   # bf16 sublane packing is (16, 128)
    divisors = [t for t in range(sub, H + 1, sub) if H % t == 0]
    fitting = [t for t in divisors if block_bytes(t) <= budget]
    if fitting:
        TH = max(fitting)
        if N == 1 and TH == H:                   # keep >=2 grid steps for v7x's 2 TCs
            smaller = [t for t in fitting if t < H]
            if smaller:
                TH = max(smaller)
    elif divisors:
        TH = min(divisors)                       # huge W: smallest legal tile
    else:
        TH = H                                   # no multiple-of-8 divisor: full-H block

    vmem_limit = int(min(0.75 * vmem_cap, max(32 << 20, block_bytes(TH) + (8 << 20))))

    # --- Row-strip size so the live set (~OC+2 planes) stays within ~48 vregs ---
    vreg_budget = 48 * 4096
    sh_cands = [s for s in range(8, TH + 1, 8)
                if TH % s == 0 and (OC + 2) * s * W * comp_item <= vreg_budget]
    if sh_cands:
        SH = max(sh_cands)
    else:
        SH = 8 if TH % 8 == 0 else TH

    grid = (N, H // TH)

    # (OC, Cin, 1, KW) -> flat scalar table for SMEM, k = (oc*Cin + ic)*KW + kw.
    w_flat = w_conv[:, :, 0, :].reshape(OC * Cin * KW).astype(jnp.float32)
    pe2 = pe.reshape(1, W).astype(jnp.float32)

    kernel = functools.partial(_tie_kernel, sh=SH, compute_dtype=compute_dtype)

    return pl.pallas_call(
        kernel,
        out_shape=jax.ShapeDtypeStruct((N, OC, H, W), out_dtype),
        grid=grid,
        in_specs=[
            pl.BlockSpec(memory_space=pltpu.MemorySpace.SMEM),            # weight scalars
            pl.BlockSpec((None, Cin, TH, W), lambda n, h: (n, 0, h, 0)),  # NCHW slab
            pl.BlockSpec((1, W), lambda n, h: (0, 0)),                    # lane-dense pe
        ],
        out_specs=pl.BlockSpec((None, OC, TH, W), lambda n, h: (n, 0, h, 0)),
        compiler_params=pltpu.CompilerParams(
            dimension_semantics=("parallel", "parallel"),
            vmem_limit_bytes=vmem_limit),
    )(w_flat, data, pe2)


def build_fix_encodings(sample_len, tie, alpha):
    """torch.range(0, sample_len) then in-place sinusoidal rewrite of indices [0, sample_len)."""
    base = jnp.arange(0, sample_len + 1, dtype=jnp.float32)          # length sample_len + 1
    if tie == "sinusoidal":
        idx = jnp.arange(sample_len + 1)
        sin_cos = jnp.where(idx % 2 == 0, jnp.sin(base / alpha), jnp.cos(base / alpha))
        # Reference loop runs for i in range(sample_len): last entry left untouched.
        base = jnp.where(idx < sample_len, sin_cos, base)
    return base


def _reference(data, w_conv, pe):
    """Pure-JAX reference: learned conv + ones-weight 'pooling' conv * encoding."""
    KW = w_conv.shape[-1]
    pad = (KW - 1) // 2
    conv = lax.conv_general_dilated(
        data, w_conv, window_strides=(1, 1), padding=((0, 0), (pad, pad)),
        dimension_numbers=("NCHW", "OIHW", "NCHW"))
    pool = lax.conv_general_dilated(
        data, jnp.ones_like(w_conv), window_strides=(1, 1), padding=((0, 0), (pad, pad)),
        dimension_numbers=("NCHW", "OIHW", "NCHW"))
    return conv + pool * pe.reshape(1, 1, 1, -1)


if __name__ == "__main__":
    key = jax.random.PRNGKey(0)
    k1, k2, k3, k4 = jax.random.split(key, 4)
    alpha = 2
    scale_factor = jnp.float32(0.5)   # trainable scalar (torch init zeros); nonzero to exercise TIE

    # --- Run 1: f32 compute, bit-tight check (matches the PyTorch f32 forward) ---
    N, Cin, H, W = 2, 4, 16, 128      # NCHW input
    OC, KW = 8, 3                     # Conv2d(Cin, OC, (1, KW), padding=(0, 1), bias=False)
    data = jax.random.normal(k1, (N, Cin, H, W), dtype=jnp.float32)
    w_conv = 0.1 * jax.random.normal(k2, (OC, Cin, 1, KW), dtype=jnp.float32)
    pe = build_fix_encodings(W - 1, "sinusoidal", alpha) * scale_factor

    out = jax.block_until_ready(tie_layer_forward(data, w_conv, pe))
    ref = _reference(data, w_conv, pe)
    assert out.shape == (N, OC, H, W)
    err = float(jnp.max(jnp.abs(out - ref)))
    assert jnp.allclose(out, ref, rtol=1e-4, atol=1e-4), err

    # --- Run 2: bf16 compute + bf16 output (v6e/v7x fast path), larger tile,
    #     exercises the in-kernel row-strip fori_loop and the N==1 grid split. ---
    N2, Cin2, H2, W2 = 1, 4, 64, 512
    OC2, KW2 = 8, 5
    data2 = jax.random.normal(k3, (N2, Cin2, H2, W2), dtype=jnp.float32)
    w2 = 0.1 * jax.random.normal(k4, (OC2, Cin2, 1, KW2), dtype=jnp.float32)
    pe2 = build_fix_encodings(W2 - 1, "sinusoidal", alpha) * scale_factor

    out2 = jax.block_until_ready(
        tie_layer_forward(data2, w2, pe2,
                          compute_dtype=jnp.bfloat16, out_dtype=jnp.bfloat16))
    ref2 = _reference(data2, w2, pe2)
    err2 = float(jnp.max(jnp.abs(out2.astype(jnp.float32) - ref2)))
    ref_mag = float(jnp.max(jnp.abs(ref2)))
    assert err2 <= 5e-2 * ref_mag + 5e-2, (err2, ref_mag)

    print("KERNEL_OK")
</pallas_src>

<mosaic_0001>
module attributes {stable_mosaic.version = 11 : i64} {
  func.func @_tie_kernel(%arg0: i32, %arg1: i32, %arg2: memref<96xf32, #tpu.memory_space<smem>>, %arg3: memref<1x4x16x128xf32, #tpu.memory_space<vmem>>, %arg4: memref<1x128xf32, #tpu.memory_space<vmem>>, %arg5: memref<1x8x16x128xf32, #tpu.memory_space<vmem>>) attributes {dimension_semantics = [#tpu.dimension_semantics<parallel>, #tpu.dimension_semantics<parallel>], iteration_bounds = array<i64: 2, 1>, scalar_prefetch = 0 : i64, scratch_operands = 0 : i64, tpu.core_type = #tpu.core_type<tc>, window_params = [{transform_indices = @transform_0, window_bounds = array<i64: 96>}, {transform_indices = @transform_1, window_bounds = array<i64: 1, 4, 16, 128>}, {pipeline_mode = #tpu.pipeline_mode<synchronous>, transform_indices = @transform_2, window_bounds = array<i64: 1, 128>}, {transform_indices = @transform_3, window_bounds = array<i64: 1, 8, 16, 128>}]} {
    %c0 = arith.constant 0 : index
    %c0_0 = arith.constant 0 : index
    %0 = vector.load %arg4[%c0, %c0_0] : memref<1x128xf32, #tpu.memory_space<vmem>>, vector<1x128xf32>
    %1 = tpu.iota {dimensions = array<i32: 1>} : vector<1x128xi32>
    %c1_i32 = arith.constant 1 : i32
    %2 = vector.broadcast %c1_i32 : i32 to vector<1x128xi32>
    %3 = arith.cmpi sge, %1, %2 : vector<1x128xi32>
    %c127_i32 = arith.constant 127 : i32
    %4 = vector.broadcast %c127_i32 : i32 to vector<1x128xi32>
    %5 = arith.cmpi slt, %1, %4 : vector<1x128xi32>
    %cst = arith.constant 0.000000e+00 : f32
    %6 = vector.broadcast %cst : f32 to vector<16x128xf32>
    %cst_1 = arith.constant 0.000000e+00 : f32
    %7 = vector.broadcast %cst_1 : f32 to vector<16x128xf32>
    %cst_2 = arith.constant 0.000000e+00 : f32
    %8 = vector.broadcast %cst_2 : f32 to vector<16x128xf32>
    %cst_3 = arith.constant 0.000000e+00 : f32
    %9 = vector.broadcast %cst_3 : f32 to vector<16x128xf32>
    %cst_4 = arith.constant 0.000000e+00 : f32
    %10 = vector.broadcast %cst_4 : f32 to vector<16x128xf32>
    %cst_5 = arith.constant 0.000000e+00 : f32
    %11 = vector.broadcast %cst_5 : f32 to vector<16x128xf32>
    %cst_6 = arith.constant 0.000000e+00 : f32
    %12 = vector.broadcast %cst_6 : f32 to vector<16x128xf32>
    %cst_7 = arith.constant 0.000000e+00 : f32
    %13 = vector.broadcast %cst_7 : f32 to vector<16x128xf32>
    %c0_8 = arith.constant 0 : index
    %c0_9 = arith.constant 0 : index
    %c0_10 = arith.constant 0 : index
    %c0_11 = arith.constant 0 : index
    %14 = vector.load %arg3[%c0_8, %c0_9, %c0_10, %c0_11] : memref<1x4x16x128xf32, #tpu.memory_space<vmem>>, vector<1x1x16x128xf32>
    %15 = vector.shape_cast %14 : vector<1x1x16x128xf32> to vector<16x128xf32>
    %c1_i32_12 = arith.constant 1 : i32
    %16 = tpu.dynamic_rotate %15 by %c1_i32_12 dim 1 : vector<16x128xf32>, i32 -> vector<16x128xf32>
    %cst_13 = arith.constant 0.000000e+00 : f32
    %17 = vector.shape_cast %3 : vector<1x128xi1> to vector<1x128xi1>
    %18 = vector.broadcast %17 : vector<1x128xi1> to vector<16x128xi1>
    %19 = vector.broadcast %cst_13 : f32 to vector<16x128xf32>
    %20 = arith.select %18, %16, %19 : vector<16x128xi1>, vector<16x128xf32>
    %c0_14 = arith.constant 0 : index
    %21 = memref.load %arg2[%c0_14] : memref<96xf32, #tpu.memory_space<smem>>
    %22 = vector.broadcast %21 : f32 to vector<1x128xf32>
    %23 = arith.addf %22, %0 : vector<1x128xf32>
    %24 = vector.broadcast %23 : vector<1x128xf32> to vector<16x128xf32>
    %25 = arith.mulf %24, %20 : vector<16x128xf32>
    %26 = arith.addf %6, %25 : vector<16x128xf32>
    %c12 = arith.constant 12 : index
    %27 = memref.load %arg2[%c12] : memref<96xf32, #tpu.memory_space<smem>>
    %28 = vector.broadcast %27 : f32 to vector<1x128xf32>
    %29 = arith.addf %28, %0 : vector<1x128xf32>
    %30 = vector.broadcast %29 : vector<1x128xf32> to vector<16x128xf32>
    %31 = arith.mulf %30, %20 : vector<16x128xf32>
    %32 = arith.addf %7, %31 : vector<16x128xf32>
    %c24 = arith.constant 24 : index
    %33 = memref.load %arg2[%c24] : memref<96xf32, #tpu.memory_space<smem>>
    %34 = vector.broadcast %33 : f32 to vector<1x128xf32>
    %35 = arith.addf %34, %0 : vector<1x128xf32>
    %36 = vector.broadcast %35 : vector<1x128xf32> to vector<16x128xf32>
    %37 = arith.mulf %36, %20 : vector<16x128xf32>
    %38 = arith.addf %8, %37 : vector<16x128xf32>
    %c36 = arith.constant 36 : index
    %39 = memref.load %arg2[%c36] : memref<96xf32, #tpu.memory_space<smem>>
    %40 = vector.broadcast %39 : f32 to vector<1x128xf32>
    %41 = arith.addf %40, %0 : vector<1x128xf32>
    %42 = vector.broadcast %41 : vector<1x128xf32> to vector<16x128xf32>
    %43 = arith.mulf %42, %20 : vector<16x128xf32>
    %44 = arith.addf %9, %43 : vector<16x128xf32>
    %c48 = arith.constant 48 : index
    %45 = memref.load %arg2[%c48] : memref<96xf32, #tpu.memory_space<smem>>
    %46 = vector.broadcast %45 : f32 to vector<1x128xf32>
    %47 = arith.addf %46, %0 : vector<1x128xf32>
    %48 = vector.broadcast %47 : vector<1x128xf32> to vector<16x128xf32>
    %49 = arith.mulf %48, %20 : vector<16x128xf32>
    %50 = arith.addf %10, %49 : vector<16x128xf32>
    %c60 = arith.constant 60 : index
    %51 = memref.load %arg2[%c60] : memref<96xf32, #tpu.memory_space<smem>>
    %52 = vector.broadcast %51 : f32 to vector<1x128xf32>
    %53 = arith.addf %52, %0 : vector<1x128xf32>
    %54 = vector.broadcast %53 : vector<1x128xf32> to vector<16x128xf32>
    %55 = arith.mulf %54, %20 : vector<16x128xf32>
    %56 = arith.addf %11, %55 : vector<16x128xf32>
    %c72 = arith.constant 72 : index
    %57 = memref.load %arg2[%c72] : memref<96xf32, #tpu.memory_space<smem>>
    %58 = vector.broadcast %57 : f32 to vector<1x128xf32>
    %59 = arith.addf %58, %0 : vector<1x128xf32>
    %60 = vector.broadcast %59 : vector<1x128xf32> to vector<16x128xf32>
    %61 = arith.mulf %60, %20 : vector<16x128xf32>
    %62 = arith.addf %12, %61 : vector<16x128xf32>
    %c84 = arith.constant 84 : index
    %63 = memref.load %arg2[%c84] : memref<96xf32, #tpu.memory_space<smem>>
    %64 = vector.broadcast %63 : f32 to vector<1x128xf32>
    %65 = arith.addf %64, %0 : vector<1x128xf32>
    %66 = vector.broadcast %65 : vector<1x128xf32> to vector<16x128xf32>
    %67 = arith.mulf %66, %20 : vector<16x128xf32>
    %68 = arith.addf %13, %67 : vector<16x128xf32>
    %c0_15 = arith.constant 0 : index
    %c1 = arith.constant 1 : index
    %c0_16 = arith.constant 0 : index
    %c0_17 = arith.constant 0 : index
    %69 = vector.load %arg3[%c0_15, %c1, %c0_16, %c0_17] : memref<1x4x16x128xf32, #tpu.memory_space<vmem>>, vector<1x1x16x128xf32>
    %70 = vector.shape_cast %69 : vector<1x1x16x128xf32> to vector<16x128xf32>
    %c1_i32_18 = arith.constant 1 : i32
    %71 = tpu.dynamic_rotate %70 by %c1_i32_18 dim 1 : vector<16x128xf32>, i32 -> vector<16x128xf32>
    %cst_19 = arith.constant 0.000000e+00 : f32
    %72 = vector.shape_cast %3 : vector<1x128xi1> to vector<1x128xi1>
    %73 = vector.broadcast %72 : vector<1x128xi1> to vector<16x128xi1>
    %74 = vector.broadcast %cst_19 : f32 to vector<16x128xf32>
    %75 = arith.select %73, %71, %74 : vector<16x128xi1>, vector<16x128xf32>
    %c3 = arith.constant 3 : index
    %76 = memref.load %arg2[%c3] : memref<96xf32, #tpu.memory_space<smem>>
    %77 = vector.broadcast %76 : f32 to vector<1x128xf32>
    %78 = arith.addf %77, %0 : vector<1x128xf32>
    %79 = vector.broadcast %78 : vector<1x128xf32> to vector<16x128xf32>
    %80 = arith.mulf %79, %75 : vector<16x128xf32>
    %81 = arith.addf %26, %80 : vector<16x128xf32>
    %c15 = arith.constant 15 : index
    %82 = memref.load %arg2[%c15] : memref<96xf32, #tpu.memory_space<smem>>
    %83 = vector.broadcast %82 : f32 to vector<1x128xf32>
    %84 = arith.addf %83, %0 : vector<1x128xf32>
    %85 = vector.broadcast %84 : vector<1x128xf32> to vector<16x128xf32>
    %86 = arith.mulf %85, %75 : vector<16x128xf32>
    %87 = arith.addf %32, %86 : vector<16x128xf32>
    %c27 = arith.constant 27 : index
    %88 = memref.load %arg2[%c27] : memref<96xf32, #tpu.memory_space<smem>>
    %89 = vector.broadcast %88 : f32 to vector<1x128xf32>
    %90 = arith.addf %89, %0 : vector<1x128xf32>
    %91 = vector.broadcast %90 : vector<1x128xf32> to vector<16x128xf32>
    %92 = arith.mulf %91, %75 : vector<16x128xf32>
    %93 = arith.addf %38, %92 : vector<16x128xf32>
    %c39 = arith.constant 39 : index
    %94 = memref.load %arg2[%c39] : memref<96xf32, #tpu.memory_space<smem>>
    %95 = vector.broadcast %94 : f32 to vector<1x128xf32>
    %96 = arith.addf %95, %0 : vector<1x128xf32>
    %97 = vector.broadcast %96 : vector<1x128xf32> to vector<16x128xf32>
    %98 = arith.mulf %97, %75 : vector<16x128xf32>
    %99 = arith.addf %44, %98 : vector<16x128xf32>
    %c51 = arith.constant 51 : index
    %100 = memref.load %arg2[%c51] : memref<96xf32, #tpu.memory_space<smem>>
    %101 = vector.broadcast %100 : f32 to vector<1x128xf32>
    %102 = arith.addf %101, %0 : vector<1x128xf32>
    %103 = vector.broadcast %102 : vector<1x128xf32> to vector<16x128xf32>
    %104 = arith.mulf %103, %75 : vector<16x128xf32>
    %105 = arith.addf %50, %104 : vector<16x128xf32>
    %c63 = arith.constant 63 : index
    %106 = memref.load %arg2[%c63] : memref<96xf32, #tpu.memory_space<smem>>
    %107 = vector.broadcast %106 : f32 to vector<1x128xf32>
    %108 = arith.addf %107, %0 : vector<1x128xf32>
    %109 = vector.broadcast %108 : vector<1x128xf32> to vector<16x128xf32>
    %110 = arith.mulf %109, %75 : vector<16x128xf32>
    %111 = arith.addf %56, %110 : vector<16x128xf32>
    %c75 = arith.constant 75 : index
    %112 = memref.load %arg2[%c75] : memref<96xf32, #tpu.memory_space<smem>>
    %113 = vector.broadcast %112 : f32 to vector<1x128xf32>
    %114 = arith.addf %113, %0 : vector<1x128xf32>
    %115 = vector.broadcast %114 : vector<1x128xf32> to vector<16x128xf32>
    %116 = arith.mulf %115, %75 : vector<16x128xf32>
    %117 = arith.addf %62, %116 : vector<16x128xf32>
    %c87 = arith.constant 87 : index
    %118 = memref.load %arg2[%c87] : memref<96xf32, #tpu.memory_space<smem>>
    %119 = vector.broadcast %118 : f32 to vector<1x128xf32>
    %120 = arith.addf %119, %0 : vector<1x128xf32>
    %121 = vector.broadcast %120 : vector<1x128xf32> to vector<16x128xf32>
    %122 = arith.mulf %121, %75 : vector<16x128xf32>
    %123 = arith.addf %68, %122 : vector<16x128xf32>
    %c0_20 = arith.constant 0 : index
    %c2 = arith.constant 2 : index
    %c0_21 = arith.constant 0 : index
    %c0_22 = arith.constant 0 : index
    %124 = vector.load %arg3[%c0_20, %c2, %c0_21, %c0_22] : memref<1x4x16x128xf32, #tpu.memory_space<vmem>>, vector<1x1x16x128xf32>
    %125 = vector.shape_cast %124 : vector<1x1x16x128xf32> to vector<16x128xf32>
    %c1_i32_23 = arith.constant 1 : i32
    %126 = tpu.dynamic_rotate %125 by %c1_i32_23 dim 1 : vector<16x128xf32>, i32 -> vector<16x128xf32>
    %cst_24 = arith.constant 0.000000e+00 : f32
    %127 = vector.shape_cast %3 : vector<1x128xi1> to vector<1x128xi1>
    %128 = vector.broadcast %127 : vector<1x128xi1> to vector<16x128xi1>
    %129 = vector.broadcast %cst_24 : f32 to vector<16x128xf32>
    %130 = arith.select %128, %126, %129 : vector<16x128xi1>, vector<16x128xf32>
    %c6 = arith.constant 6 : index
    %131 = memref.load %arg2[%c6] : memref<96xf32, #tpu.memory_space<smem>>
    %132 = vector.broadcast %131 : f32 to vector<1x128xf32>
    %133 = arith.addf %132, %0 : vector<1x128xf32>
    %134 = vector.broadcast %133 : vector<1x128xf32> to vector<16x128xf32>
    %135 = arith.mulf %134, %130 : vector<16x128xf32>
    %136 = arith.addf %81, %135 : vector<16x128xf32>
    %c18 = arith.constant 18 : index
    %137 = memref.load %arg2[%c18] : memref<96xf32, #tpu.memory_space<smem>>
    %138 = vector.broadcast %137 : f32 to vector<1x128xf32>
    %139 = arith.addf %138, %0 : vector<1x128xf32>
    %140 = vector.broadcast %139 : vector<1x128xf32> to vector<16x128xf32>
    %141 = arith.mulf %140, %130 : vector<16x128xf32>
    %142 = arith.addf %87, %141 : vector<16x128xf32>
    %c30 = arith.constant 30 : index
    %143 = memref.load %arg2[%c30] : memref<96xf32, #tpu.memory_space<smem>>
    %144 = vector.broadcast %143 : f32 to vector<1x128xf32>
    %145 = arith.addf %144, %0 : vector<1x128xf32>
    %146 = vector.broadcast %145 : vector<1x128xf32> to vector<16x128xf32>
    %147 = arith.mulf %146, %130 : vector<16x128xf32>
    %148 = arith.addf %93, %147 : vector<16x128xf32>
    %c42 = arith.constant 42 : index
    %149 = memref.load %arg2[%c42] : memref<96xf32, #tpu.memory_space<smem>>
    %150 = vector.broadcast %149 : f32 to vector<1x128xf32>
    %151 = arith.addf %150, %0 : vector<1x128xf32>
    %152 = vector.broadcast %151 : vector<1x128xf32> to vector<16x128xf32>
    %153 = arith.mulf %152, %130 : vector<16x128xf32>
    %154 = arith.addf %99, %153 : vector<16x128xf32>
    %c54 = arith.constant 54 : index
    %155 = memref.load %arg2[%c54] : memref<96xf32, #tpu.memory_space<smem>>
    %156 = vector.broadcast %155 : f32 to vector<1x128xf32>
    %157 = arith.addf %156, %0 : vector<1x128xf32>
    %158 = vector.broadcast %157 : vector<1x128xf32> to vector<16x128xf32>
    %159 = arith.mulf %158, %130 : vector<16x128xf32>
    %160 = arith.addf %105, %159 : vector<16x128xf32>
    %c66 = arith.constant 66 : index
    %161 = memref.load %arg2[%c66] : memref<96xf32, #tpu.memory_space<smem>>
    %162 = vector.broadcast %161 : f32 to vector<1x128xf32>
    %163 = arith.addf %162, %0 : vector<1x128xf32>
    %164 = vector.broadcast %163 : vector<1x128xf32> to vector<16x128xf32>
    %165 = arith.mulf %164, %130 : vector<16x128xf32>
    %166 = arith.addf %111, %165 : vector<16x128xf32>
    %c78 = arith.constant 78 : index
    %167 = memref.load %arg2[%c78] : memref<96xf32, #tpu.memory_space<smem>>
    %168 = vector.broadcast %167 : f32 to vector<1x128xf32>
    %169 = arith.addf %168, %0 : vector<1x128xf32>
    %170 = vector.broadcast %169 : vector<1x128xf32> to vector<16x128xf32>
    %171 = arith.mulf %170, %130 : vector<16x128xf32>
    %172 = arith.addf %117, %171 : vector<16x128xf32>
    %c90 = arith.constant 90 : index
    %173 = memref.load %arg2[%c90] : memref<96xf32, #tpu.memory_space<smem>>
    %174 = vector.broadcast %173 : f32 to vector<1x128xf32>
    %175 = arith.addf %174, %0 : vector<1x128xf32>
    %176 = vector.broadcast %175 : vector<1x128xf32> to vector<16x128xf32>
    %177 = arith.mulf %176, %130 : vector<16x128xf32>
    %178 = arith.addf %123, %177 : vector<16x128xf32>
    %c0_25 = arith.constant 0 : index
    %c3_26 = arith.constant 3 : index
    %c0_27 = arith.constant 0 : index
    %c0_28 = arith.constant 0 : index
    %179 = vector.load %arg3[%c0_25, %c3_26, %c0_27, %c0_28] : memref<1x4x16x128xf32, #tpu.memory_space<vmem>>, vector<1x1x16x128xf32>
    %180 = vector.shape_cast %179 : vector<1x1x16x128xf32> to vector<16x128xf32>
    %c1_i32_29 = arith.constant 1 : i32
    %181 = tpu.dynamic_rotate %180 by %c1_i32_29 dim 1 : vector<16x128xf32>, i32 -> vector<16x128xf32>
    %cst_30 = arith.constant 0.000000e+00 : f32
    %182 = vector.shape_cast %3 : vector<1x128xi1> to vector<1x128xi1>
    %183 = vector.broadcast %182 : vector<1x128xi1> to vector<16x128xi1>
    %184 = vector.broadcast %cst_30 : f32 to vector<16x128xf32>
    %185 = arith.select %183, %181, %184 : vector<16x128xi1>, vector<16x128xf32>
    %c9 = arith.constant 9 : index
    %186 = memref.load %arg2[%c9] : memref<96xf32, #tpu.memory_space<smem>>
    %187 = vector.broadcast %186 : f32 to vector<1x128xf32>
    %188 = arith.addf %187, %0 : vector<1x128xf32>
    %189 = vector.broadcast %188 : vector<1x128xf32> to vector<16x128xf32>
    %190 = arith.mulf %189, %185 : vector<16x128xf32>
    %191 = arith.addf %136, %190 : vector<16x128xf32>
    %c21 = arith.constant 21 : index
    %192 = memref.load %arg2[%c21] : memref<96xf32, #tpu.memory_space<smem>>
    %193 = vector.broadcast %192 : f32 to vector<1x128xf32>
    %194 = arith.addf %193, %0 : vector<1x128xf32>
    %195 = vector.broadcast %194 : vector<1x128xf32> to vector<16x128xf32>
    %196 = arith.mulf %195, %185 : vector<16x128xf32>
    %197 = arith.addf %142, %196 : vector<16x128xf32>
    %c33 = arith.constant 33 : index
    %198 = memref.load %arg2[%c33] : memref<96xf32, #tpu.memory_space<smem>>
    %199 = vector.broadcast %198 : f32 to vector<1x128xf32>
    %200 = arith.addf %199, %0 : vector<1x128xf32>
    %201 = vector.broadcast %200 : vector<1x128xf32> to vector<16x128xf32>
    %202 = arith.mulf %201, %185 : vector<16x128xf32>
    %203 = arith.addf %148, %202 : vector<16x128xf32>
    %c45 = arith.constant 45 : index
    %204 = memref.load %arg2[%c45] : memref<96xf32, #tpu.memory_space<smem>>
    %205 = vector.broadcast %204 : f32 to vector<1x128xf32>
    %206 = arith.addf %205, %0 : vector<1x128xf32>
    %207 = vector.broadcast %206 : vector<1x128xf32> to vector<16x128xf32>
    %208 = arith.mulf %207, %185 : vector<16x128xf32>
    %209 = arith.addf %154, %208 : vector<16x128xf32>
    %c57 = arith.constant 57 : index
    %210 = memref.load %arg2[%c57] : memref<96xf32, #tpu.memory_space<smem>>
    %211 = vector.broadcast %210 : f32 to vector<1x128xf32>
    %212 = arith.addf %211, %0 : vector<1x128xf32>
    %213 = vector.broadcast %212 : vector<1x128xf32> to vector<16x128xf32>
    %214 = arith.mulf %213, %185 : vector<16x128xf32>
    %215 = arith.addf %160, %214 : vector<16x128xf32>
    %c69 = arith.constant 69 : index
    %216 = memref.load %arg2[%c69] : memref<96xf32, #tpu.memory_space<smem>>
    %217 = vector.broadcast %216 : f32 to vector<1x128xf32>
    %218 = arith.addf %217, %0 : vector<1x128xf32>
    %219 = vector.broadcast %218 : vector<1x128xf32> to vector<16x128xf32>
    %220 = arith.mulf %219, %185 : vector<16x128xf32>
    %221 = arith.addf %166, %220 : vector<16x128xf32>
    %c81 = arith.constant 81 : index
    %222 = memref.load %arg2[%c81] : memref<96xf32, #tpu.memory_space<smem>>
    %223 = vector.broadcast %222 : f32 to vector<1x128xf32>
    %224 = arith.addf %223, %0 : vector<1x128xf32>
    %225 = vector.broadcast %224 : vector<1x128xf32> to vector<16x128xf32>
    %226 = arith.mulf %225, %185 : vector<16x128xf32>
    %227 = arith.addf %172, %226 : vector<16x128xf32>
    %c93 = arith.constant 93 : index
    %228 = memref.load %arg2[%c93] : memref<96xf32, #tpu.memory_space<smem>>
    %229 = vector.broadcast %228 : f32 to vector<1x128xf32>
    %230 = arith.addf %229, %0 : vector<1x128xf32>
    %231 = vector.broadcast %230 : vector<1x128xf32> to vector<16x128xf32>
    %232 = arith.mulf %231, %185 : vector<16x128xf32>
    %233 = arith.addf %178, %232 : vector<16x128xf32>
    %c0_31 = arith.constant 0 : index
    %c0_32 = arith.constant 0 : index
    %c0_33 = arith.constant 0 : index
    %c0_34 = arith.constant 0 : index
    %234 = vector.load %arg3[%c0_31, %c0_32, %c0_33, %c0_34] : memref<1x4x16x128xf32, #tpu.memory_space<vmem>>, vector<1x1x16x128xf32>
    %235 = vector.shape_cast %234 : vector<1x1x16x128xf32> to vector<16x128xf32>
    %c1_35 = arith.constant 1 : index
    %236 = memref.load %arg2[%c1_35] : memref<96xf32, #tpu.memory_space<smem>>
    %237 = vector.broadcast %236 : f32 to vector<1x128xf32>
    %238 = arith.addf %237, %0 : vector<1x128xf32>
    %239 = vector.broadcast %238 : vector<1x128xf32> to vector<16x128xf32>
    %240 = arith.mulf %239, %235 : vector<16x128xf32>
    %241 = arith.addf %191, %240 : vector<16x128xf32>
    %c13 = arith.constant 13 : index
    %242 = memref.load %arg2[%c13] : memref<96xf32, #tpu.memory_space<smem>>
    %243 = vector.broadcast %242 : f32 to vector<1x128xf32>
    %244 = arith.addf %243, %0 : vector<1x128xf32>
    %245 = vector.broadcast %244 : vector<1x128xf32> to vector<16x128xf32>
    %246 = arith.mulf %245, %235 : vector<16x128xf32>
    %247 = arith.addf %197, %246 : vector<16x128xf32>
    %c25 = arith.constant 25 : index
    %248 = memref.load %arg2[%c25] : memref<96xf32, #tpu.memory_space<smem>>
    %249 = vector.broadcast %248 : f32 to vector<1x128xf32>
    %250 = arith.addf %249, %0 : vector<1x128xf32>
    %251 = vector.broadcast %250 : vector<1x128xf32> to vector<16x128xf32>
    %252 = arith.mulf %251, %235 : vector<16x128xf32>
    %253 = arith.addf %203, %252 : vector<16x128xf32>
    %c37 = arith.constant 37 : index
    %254 = memref.load %arg2[%c37] : memref<96xf32, #tpu.memory_space<smem>>
    %255 = vector.broadcast %254 : f32 to vector<1x128xf32>
    %256 = arith.addf %255, %0 : vector<1x128xf32>
    %257 = vector.broadcast %256 : vector<1x128xf32> to vector<16x128xf32>
    %258 = arith.mulf %257, %235 : vector<16x128xf32>
    %259 = arith.addf %209, %258 : vector<16x128xf32>
    %c49 = arith.constant 49 : index
    %260 = memref.load %arg2[%c49] : memref<96xf32, #tpu.memory_space<smem>>
    %261 = vector.broadcast %260 : f32 to vector<1x128xf32>
    %262 = arith.addf %261, %0 : vector<1x128xf32>
    %263 = vector.broadcast %262 : vector<1x128xf32> to vector<16x128xf32>
    %264 = arith.mulf %263, %235 : vector<16x128xf32>
    %265 = arith.addf %215, %264 : vector<16x128xf32>
    %c61 = arith.constant 61 : index
    %266 = memref.load %arg2[%c61] : memref<96xf32, #tpu.memory_space<smem>>
    %267 = vector.broadcast %266 : f32 to vector<1x128xf32>
    %268 = arith.addf %267, %0 : vector<1x128xf32>
    %269 = vector.broadcast %268 : vector<1x128xf32> to vector<16x128xf32>
    %270 = arith.mulf %269, %235 : vector<16x128xf32>
    %271 = arith.addf %221, %270 : vector<16x128xf32>
    %c73 = arith.constant 73 : index
    %272 = memref.load %arg2[%c73] : memref<96xf32, #tpu.memory_space<smem>>
    %273 = vector.broadcast %272 : f32 to vector<1x128xf32>
    %274 = arith.addf %273, %0 : vector<1x128xf32>
    %275 = vector.broadcast %274 : vector<1x128xf32> to vector<16x128xf32>
    %276 = arith.mulf %275, %235 : vector<16x128xf32>
    %277 = arith.addf %227, %276 : vector<16x128xf32>
    %c85 = arith.constant 85 : index
    %278 = memref.load %arg2[%c85] : memref<96xf32, #tpu.memory_space<smem>>
    %279 = vector.broadcast %278 : f32 to vector<1x128xf32>
    %280 = arith.addf %279, %0 : vector<1x128xf32>
    %281 = vector.broadcast %280 : vector<1x128xf32> to vector<16x128xf32>
    %282 = arith.mulf %281, %235 : vector<16x128xf32>
    %283 = arith.addf %233, %282 : vector<16x128xf32>
    %c0_36 = arith.constant 0 : index
    %c1_37 = arith.constant 1 : index
    %c0_38 = arith.constant 0 : index
    %c0_39 = arith.constant 0 : index
    %284 = vector.load %arg3[%c0_36, %c1_37, %c0_38, %c0_39] : memref<1x4x16x128xf32, #tpu.memory_space<vmem>>, vector<1x1x16x128xf32>
    %285 = vector.shape_cast %284 : vector<1x1x16x128xf32> to vector<16x128xf32>
    %c4 = arith.constant 4 : index
    %286 = memref.load %arg2[%c4] : memref<96xf32, #tpu.memory_space<smem>>
    %287 = vector.broadcast %286 : f32 to vector<1x128xf32>
    %288 = arith.addf %287, %0 : vector<1x128xf32>
    %289 = vector.broadcast %288 : vector<1x128xf32> to vector<16x128xf32>
    %290 = arith.mulf %289, %285 : vector<16x128xf32>
    %291 = arith.addf %241, %290 : vector<16x128xf32>
    %c16 = arith.constant 16 : index
    %292 = memref.load %arg2[%c16] : memref<96xf32, #tpu.memory_space<smem>>
    %293 = vector.broadcast %292 : f32 to vector<1x128xf32>
    %294 = arith.addf %293, %0 : vector<1x128xf32>
    %295 = vector.broadcast %294 : vector<1x128xf32> to vector<16x128xf32>
    %296 = arith.mulf %295, %285 : vector<16x128xf32>
    %297 = arith.addf %247, %296 : vector<16x128xf32>
    %c28 = arith.constant 28 : index
    %298 = memref.load %arg2[%c28] : memref<96xf32, #tpu.memory_space<smem>>
    %299 = vector.broadcast %298 : f32 to vector<1x128xf32>
    %300 = arith.addf %299, %0 : vector<1x128xf32>
    %301 = vector.broadcast %300 : vector<1x128xf32> to vector<16x128xf32>
    %302 = arith.mulf %301, %285 : vector<16x128xf32>
    %303 = arith.addf %253, %302 : vector<16x128xf32>
    %c40 = arith.constant 40 : index
    %304 = memref.load %arg2[%c40] : memref<96xf32, #tpu.memory_space<smem>>
    %305 = vector.broadcast %304 : f32 to vector<1x128xf32>
    %306 = arith.addf %305, %0 : vector<1x128xf32>
    %307 = vector.broadcast %306 : vector<1x128xf32> to vector<16x128xf32>
    %308 = arith.mulf %307, %285 : vector<16x128xf32>
    %309 = arith.addf %259, %308 : vector<16x128xf32>
    %c52 = arith.constant 52 : index
    %310 = memref.load %arg2[%c52] : memref<96xf32, #tpu.memory_space<smem>>
    %311 = vector.broadcast %310 : f32 to vector<1x128xf32>
    %312 = arith.addf %311, %0 : vector<1x128xf32>
    %313 = vector.broadcast %312 : vector<1x128xf32> to vector<16x128xf32>
    %314 = arith.mulf %313, %285 : vector<16x128xf32>
    %315 = arith.addf %265, %314 : vector<16x128xf32>
    %c64 = arith.constant 64 : index
    %316 = memref.load %arg2[%c64] : memref<96xf32, #tpu.memory_space<smem>>
    %317 = vector.broadcast %316 : f32 to vector<1x128xf32>
    %318 = arith.addf %317, %0 : vector<1x128xf32>
    %319 = vector.broadcast %318 : vector<1x128xf32> to vector<16x128xf32>
    %320 = arith.mulf %319, %285 : vector<16x128xf32>
    %321 = arith.addf %271, %320 : vector<16x128xf32>
    %c76 = arith.constant 76 : index
    %322 = memref.load %arg2[%c76] : memref<96xf32, #tpu.memory_space<smem>>
    %323 = vector.broadcast %322 : f32 to vector<1x128xf32>
    %324 = arith.addf %323, %0 : vector<1x128xf32>
    %325 = vector.broadcast %324 : vector<1x128xf32> to vector<16x128xf32>
    %326 = arith.mulf %325, %285 : vector<16x128xf32>
    %327 = arith.addf %277, %326 : vector<16x128xf32>
    %c88 = arith.constant 88 : index
    %328 = memref.load %arg2[%c88] : memref<96xf32, #tpu.memory_space<smem>>
    %329 = vector.broadcast %328 : f32 to vector<1x128xf32>
    %330 = arith.addf %329, %0 : vector<1x128xf32>
    %331 = vector.broadcast %330 : vector<1x128xf32> to vector<16x128xf32>
    %332 = arith.mulf %331, %285 : vector<16x128xf32>
    %333 = arith.addf %283, %332 : vector<16x128xf32>
    %c0_40 = arith.constant 0 : index
    %c2_41 = arith.constant 2 : index
    %c0_42 = arith.constant 0 : index
    %c0_43 = arith.constant 0 : index
    %334 = vector.load %arg3[%c0_40, %c2_41, %c0_42, %c0_43] : memref<1x4x16x128xf32, #tpu.memory_space<vmem>>, vector<1x1x16x128xf32>
    %335 = vector.shape_cast %334 : vector<1x1x16x128xf32> to vector<16x128xf32>
    %c7 = arith.constant 7 : index
    %336 = memref.load %arg2[%c7] : memref<96xf32, #tpu.memory_space<smem>>
    %337 = vector.broadcast %336 : f32 to vector<1x128xf32>
    %338 = arith.addf %337, %0 : vector<1x128xf32>
    %339 = vector.broadcast %338 : vector<1x128xf32> to vector<16x128xf32>
    %340 = arith.mulf %339, %335 : vector<16x128xf32>
    %341 = arith.addf %291, %340 : vector<16x128xf32>
    %c19 = arith.constant 19 : index
    %342 = memref.load %arg2[%c19] : memref<96xf32, #tpu.memory_space<smem>>
    %343 = vector.broadcast %342 : f32 to vector<1x128xf32>
    %344 = arith.addf %343, %0 : vector<1x128xf32>
    %345 = vector.broadcast %344 : vector<1x128xf32> to vector<16x128xf32>
    %346 = arith.mulf %345, %335 : vector<16x128xf32>
    %347 = arith.addf %297, %346 : vector<16x128xf32>
    %c31 = arith.constant 31 : index
    %348 = memref.load %arg2[%c31] : memref<96xf32, #tpu.memory_space<smem>>
    %349 = vector.broadcast %348 : f32 to vector<1x128xf32>
    %350 = arith.addf %349, %0 : vector<1x128xf32>
    %351 = vector.broadcast %350 : vector<1x128xf32> to vector<16x128xf32>
    %352 = arith.mulf %351, %335 : vector<16x128xf32>
    %353 = arith.addf %303, %352 : vector<16x128xf32>
    %c43 = arith.constant 43 : index
    %354 = memref.load %arg2[%c43] : memref<96xf32, #tpu.memory_space<smem>>
    %355 = vector.broadcast %354 : f32 to vector<1x128xf32>
    %356 = arith.addf %355, %0 : vector<1x128xf32>
    %357 = vector.broadcast %356 : vector<1x128xf32> to vector<16x128xf32>
    %358 = arith.mulf %357, %335 : vector<16x128xf32>
    %359 = arith.addf %309, %358 : vector<16x128xf32>
    %c55 = arith.constant 55 : index
    %360 = memref.load %arg2[%c55] : memref<96xf32, #tpu.memory_space<smem>>
    %361 = vector.broadcast %360 : f32 to vector<1x128xf32>
    %362 = arith.addf %361, %0 : vector<1x128xf32>
    %363 = vector.broadcast %362 : vector<1x128xf32> to vector<16x128xf32>
    %364 = arith.mulf %363, %335 : vector<16x128xf32>
    %365 = arith.addf %315, %364 : vector<16x128xf32>
    %c67 = arith.constant 67 : index
    %366 = memref.load %arg2[%c67] : memref<96xf32, #tpu.memory_space<smem>>
    %367 = vector.broadcast %366 : f32 to vector<1x128xf32>
    %368 = arith.addf %367, %0 : vector<1x128xf32>
    %369 = vector.broadcast %368 : vector<1x128xf32> to vector<16x128xf32>
    %370 = arith.mulf %369, %335 : vector<16x128xf32>
    %371 = arith.addf %321, %370 : vector<16x128xf32>
    %c79 = arith.constant 79 : index
    %372 = memref.load %arg2[%c79] : memref<96xf32, #tpu.memory_space<smem>>
    %373 = vector.broadcast %372 : f32 to vector<1x128xf32>
    %374 = arith.addf %373, %0 : vector<1x128xf32>
    %375 = vector.broadcast %374 : vector<1x128xf32> to vector<16x128xf32>
    %376 = arith.mulf %375, %335 : vector<16x128xf32>
    %377 = arith.addf %327, %376 : vector<16x128xf32>
    %c91 = arith.constant 91 : index
    %378 = memref.load %arg2[%c91] : memref<96xf32, #tpu.memory_space<smem>>
    %379 = vector.broadcast %378 : f32 to vector<1x128xf32>
    %380 = arith.addf %379, %0 : vector<1x128xf32>
    %381 = vector.broadcast %380 : vector<1x128xf32> to vector<16x128xf32>
    %382 = arith.mulf %381, %335 : vector<16x128xf32>
    %383 = arith.addf %333, %382 : vector<16x128xf32>
    %c0_44 = arith.constant 0 : index
    %c3_45 = arith.constant 3 : index
    %c0_46 = arith.constant 0 : index
    %c0_47 = arith.constant 0 : index
    %384 = vector.load %arg3[%c0_44, %c3_45, %c0_46, %c0_47] : memref<1x4x16x128xf32, #tpu.memory_space<vmem>>, vector<1x1x16x128xf32>
    %385 = vector.shape_cast %384 : vector<1x1x16x128xf32> to vector<16x128xf32>
    %c10 = arith.constant 10 : index
    %386 = memref.load %arg2[%c10] : memref<96xf32, #tpu.memory_space<smem>>
    %387 = vector.broadcast %386 : f32 to vector<1x128xf32>
    %388 = arith.addf %387, %0 : vector<1x128xf32>
    %389 = vector.broadcast %388 : vector<1x128xf32> to vector<16x128xf32>
    %390 = arith.mulf %389, %385 : vector<16x128xf32>
    %391 = arith.addf %341, %390 : vector<16x128xf32>
    %c22 = arith.constant 22 : index
    %392 = memref.load %arg2[%c22] : memref<96xf32, #tpu.memory_space<smem>>
    %393 = vector.broadcast %392 : f32 to vector<1x128xf32>
    %394 = arith.addf %393, %0 : vector<1x128xf32>
    %395 = vector.broadcast %394 : vector<1x128xf32> to vector<16x128xf32>
    %396 = arith.mulf %395, %385 : vector<16x128xf32>
    %397 = arith.addf %347, %396 : vector<16x128xf32>
    %c34 = arith.constant 34 : index
    %398 = memref.load %arg2[%c34] : memref<96xf32, #tpu.memory_space<smem>>
    %399 = vector.broadcast %398 : f32 to vector<1x128xf32>
    %400 = arith.addf %399, %0 : vector<1x128xf32>
    %401 = vector.broadcast %400 : vector<1x128xf32> to vector<16x128xf32>
    %402 = arith.mulf %401, %385 : vector<16x128xf32>
    %403 = arith.addf %353, %402 : vector<16x128xf32>
    %c46 = arith.constant 46 : index
    %404 = memref.load %arg2[%c46] : memref<96xf32, #tpu.memory_space<smem>>
    %405 = vector.broadcast %404 : f32 to vector<1x128xf32>
    %406 = arith.addf %405, %0 : vector<1x128xf32>
    %407 = vector.broadcast %406 : vector<1x128xf32> to vector<16x128xf32>
    %408 = arith.mulf %407, %385 : vector<16x128xf32>
    %409 = arith.addf %359, %408 : vector<16x128xf32>
    %c58 = arith.constant 58 : index
    %410 = memref.load %arg2[%c58] : memref<96xf32, #tpu.memory_space<smem>>
    %411 = vector.broadcast %410 : f32 to vector<1x128xf32>
    %412 = arith.addf %411, %0 : vector<1x128xf32>
    %413 = vector.broadcast %412 : vector<1x128xf32> to vector<16x128xf32>
    %414 = arith.mulf %413, %385 : vector<16x128xf32>
    %415 = arith.addf %365, %414 : vector<16x128xf32>
    %c70 = arith.constant 70 : index
    %416 = memref.load %arg2[%c70] : memref<96xf32, #tpu.memory_space<smem>>
    %417 = vector.broadcast %416 : f32 to vector<1x128xf32>
    %418 = arith.addf %417, %0 : vector<1x128xf32>
    %419 = vector.broadcast %418 : vector<1x128xf32> to vector<16x128xf32>
    %420 = arith.mulf %419, %385 : vector<16x128xf32>
    %421 = arith.addf %371, %420 : vector<16x128xf32>
    %c82 = arith.constant 82 : index
    %422 = memref.load %arg2[%c82] : memref<96xf32, #tpu.memory_space<smem>>
    %423 = vector.broadcast %422 : f32 to vector<1x128xf32>
    %424 = arith.addf %423, %0 : vector<1x128xf32>
    %425 = vector.broadcast %424 : vector<1x128xf32> to vector<16x128xf32>
    %426 = arith.mulf %425, %385 : vector<16x128xf32>
    %427 = arith.addf %377, %426 : vector<16x128xf32>
    %c94 = arith.constant 94 : index
    %428 = memref.load %arg2[%c94] : memref<96xf32, #tpu.memory_space<smem>>
    %429 = vector.broadcast %428 : f32 to vector<1x128xf32>
    %430 = arith.addf %429, %0 : vector<1x128xf32>
    %431 = vector.broadcast %430 : vector<1x128xf32> to vector<16x128xf32>
    %432 = arith.mulf %431, %385 : vector<16x128xf32>
    %433 = arith.addf %383, %432 : vector<16x128xf32>
    %c0_48 = arith.constant 0 : index
    %c0_49 = arith.constant 0 : index
    %c0_50 = arith.constant 0 : index
    %c0_51 = arith.constant 0 : index
    %434 = vector.load %arg3[%c0_48, %c0_49, %c0_50, %c0_51] : memref<1x4x16x128xf32, #tpu.memory_space<vmem>>, vector<1x1x16x128xf32>
    %435 = vector.shape_cast %434 : vector<1x1x16x128xf32> to vector<16x128xf32>
    %c127_i32_52 = arith.constant 127 : i32
    %436 = tpu.dynamic_rotate %435 by %c127_i32_52 dim 1 : vector<16x128xf32>, i32 -> vector<16x128xf32>
    %cst_53 = arith.constant 0.000000e+00 : f32
    %437 = vector.shape_cast %5 : vector<1x128xi1> to vector<1x128xi1>
    %438 = vector.broadcast %437 : vector<1x128xi1> to vector<16x128xi1>
    %439 = vector.broadcast %cst_53 : f32 to vector<16x128xf32>
    %440 = arith.select %438, %436, %439 : vector<16x128xi1>, vector<16x128xf32>
    %c2_54 = arith.constant 2 : index
    %441 = memref.load %arg2[%c2_54] : memref<96xf32, #tpu.memory_space<smem>>
    %442 = vector.broadcast %441 : f32 to vector<1x128xf32>
    %443 = arith.addf %442, %0 : vector<1x128xf32>
    %444 = vector.broadcast %443 : vector<1x128xf32> to vector<16x128xf32>
    %445 = arith.mulf %444, %440 : vector<16x128xf32>
    %446 = arith.addf %391, %445 : vector<16x128xf32>
    %c14 = arith.constant 14 : index
    %447 = memref.load %arg2[%c14] : memref<96xf32, #tpu.memory_space<smem>>
    %448 = vector.broadcast %447 : f32 to vector<1x128xf32>
    %449 = arith.addf %448, %0 : vector<1x128xf32>
    %450 = vector.broadcast %449 : vector<1x128xf32> to vector<16x128xf32>
    %451 = arith.mulf %450, %440 : vector<16x128xf32>
    %452 = arith.addf %397, %451 : vector<16x128xf32>
    %c26 = arith.constant 26 : index
    %453 = memref.load %arg2[%c26] : memref<96xf32, #tpu.memory_space<smem>>
    %454 = vector.broadcast %453 : f32 to vector<1x128xf32>
    %455 = arith.addf %454, %0 : vector<1x128xf32>
    %456 = vector.broadcast %455 : vector<1x128xf32> to vector<16x128xf32>
    %457 = arith.mulf %456, %440 : vector<16x128xf32>
    %458 = arith.addf %403, %457 : vector<16x128xf32>
    %c38 = arith.constant 38 : index
    %459 = memref.load %arg2[%c38] : memref<96xf32, #tpu.memory_space<smem>>
    %460 = vector.broadcast %459 : f32 to vector<1x128xf32>
    %461 = arith.addf %460, %0 : vector<1x128xf32>
    %462 = vector.broadcast %461 : vector<1x128xf32> to vector<16x128xf32>
    %463 = arith.mulf %462, %440 : vector<16x128xf32>
    %464 = arith.addf %409, %463 : vector<16x128xf32>
    %c50 = arith.constant 50 : index
    %465 = memref.load %arg2[%c50] : memref<96xf32, #tpu.memory_space<smem>>
    %466 = vector.broadcast %465 : f32 to vector<1x128xf32>
    %467 = arith.addf %466, %0 : vector<1x128xf32>
    %468 = vector.broadcast %467 : vector<1x128xf32> to vector<16x128xf32>
    %469 = arith.mulf %468, %440 : vector<16x128xf32>
    %470 = arith.addf %415, %469 : vector<16x128xf32>
    %c62 = arith.constant 62 : index
    %471 = memref.load %arg2[%c62] : memref<96xf32, #tpu.memory_space<smem>>
    %472 = vector.broadcast %471 : f32 to vector<1x128xf32>
    %473 = arith.addf %472, %0 : vector<1x128xf32>
    %474 = vector.broadcast %473 : vector<1x128xf32> to vector<16x128xf32>
    %475 = arith.mulf %474, %440 : vector<16x128xf32>
    %476 = arith.addf %421, %475 : vector<16x128xf32>
    %c74 = arith.constant 74 : index
    %477 = memref.load %arg2[%c74] : memref<96xf32, #tpu.memory_space<smem>>
    %478 = vector.broadcast %477 : f32 to vector<1x128xf32>
    %479 = arith.addf %478, %0 : vector<1x128xf32>
    %480 = vector.broadcast %479 : vector<1x128xf32> to vector<16x128xf32>
    %481 = arith.mulf %480, %440 : vector<16x128xf32>
    %482 = arith.addf %427, %481 : vector<16x128xf32>
    %c86 = arith.constant 86 : index
    %483 = memref.load %arg2[%c86] : memref<96xf32, #tpu.memory_space<smem>>
    %484 = vector.broadcast %483 : f32 to vector<1x128xf32>
    %485 = arith.addf %484, %0 : vector<1x128xf32>
    %486 = vector.broadcast %485 : vector<1x128xf32> to vector<16x128xf32>
    %487 = arith.mulf %486, %440 : vector<16x128xf32>
    %488 = arith.addf %433, %487 : vector<16x128xf32>
    %c0_55 = arith.constant 0 : index
    %c1_56 = arith.constant 1 : index
    %c0_57 = arith.constant 0 : index
    %c0_58 = arith.constant 0 : index
    %489 = vector.load %arg3[%c0_55, %c1_56, %c0_57, %c0_58] : memref<1x4x16x128xf32, #tpu.memory_space<vmem>>, vector<1x1x16x128xf32>
    %490 = vector.shape_cast %489 : vector<1x1x16x128xf32> to vector<16x128xf32>
    %c127_i32_59 = arith.constant 127 : i32
    %491 = tpu.dynamic_rotate %490 by %c127_i32_59 dim 1 : vector<16x128xf32>, i32 -> vector<16x128xf32>
    %cst_60 = arith.constant 0.000000e+00 : f32
    %492 = vector.shape_cast %5 : vector<1x128xi1> to vector<1x128xi1>
    %493 = vector.broadcast %492 : vector<1x128xi1> to vector<16x128xi1>
    %494 = vector.broadcast %cst_60 : f32 to vector<16x128xf32>
    %495 = arith.select %493, %491, %494 : vector<16x128xi1>, vector<16x128xf32>
    %c5 = arith.constant 5 : index
    %496 = memref.load %arg2[%c5] : memref<96xf32, #tpu.memory_space<smem>>
    %497 = vector.broadcast %496 : f32 to vector<1x128xf32>
    %498 = arith.addf %497, %0 : vector<1x128xf32>
    %499 = vector.broadcast %498 : vector<1x128xf32> to vector<16x128xf32>
    %500 = arith.mulf %499, %495 : vector<16x128xf32>
    %501 = arith.addf %446, %500 : vector<16x128xf32>
    %c17 = arith.constant 17 : index
    %502 = memref.load %arg2[%c17] : memref<96xf32, #tpu.memory_space<smem>>
    %503 = vector.broadcast %502 : f32 to vector<1x128xf32>
    %504 = arith.addf %503, %0 : vector<1x128xf32>
    %505 = vector.broadcast %504 : vector<1x128xf32> to vector<16x128xf32>
    %506 = arith.mulf %505, %495 : vector<16x128xf32>
    %507 = arith.addf %452, %506 : vector<16x128xf32>
    %c29 = arith.constant 29 : index
    %508 = memref.load %arg2[%c29] : memref<96xf32, #tpu.memory_space<smem>>
    %509 = vector.broadcast %508 : f32 to vector<1x128xf32>
    %510 = arith.addf %509, %0 : vector<1x128xf32>
    %511 = vector.broadcast %510 : vector<1x128xf32> to vector<16x128xf32>
    %512 = arith.mulf %511, %495 : vector<16x128xf32>
    %513 = arith.addf %458, %512 : vector<16x128xf32>
    %c41 = arith.constant 41 : index
    %514 = memref.load %arg2[%c41] : memref<96xf32, #tpu.memory_space<smem>>
    %515 = vector.broadcast %514 : f32 to vector<1x128xf32>
    %516 = arith.addf %515, %0 : vector<1x128xf32>
    %517 = vector.broadcast %516 : vector<1x128xf32> to vector<16x128xf32>
    %518 = arith.mulf %517, %495 : vector<16x128xf32>
    %519 = arith.addf %464, %518 : vector<16x128xf32>
    %c53 = arith.constant 53 : index
    %520 = memref.load %arg2[%c53] : memref<96xf32, #tpu.memory_space<smem>>
    %521 = vector.broadcast %520 : f32 to vector<1x128xf32>
    %522 = arith.addf %521, %0 : vector<1x128xf32>
    %523 = vector.broadcast %522 : vector<1x128xf32> to vector<16x128xf32>
    %524 = arith.mulf %523, %495 : vector<16x128xf32>
    %525 = arith.addf %470, %524 : vector<16x128xf32>
    %c65 = arith.constant 65 : index
    %526 = memref.load %arg2[%c65] : memref<96xf32, #tpu.memory_space<smem>>
    %527 = vector.broadcast %526 : f32 to vector<1x128xf32>
    %528 = arith.addf %527, %0 : vector<1x128xf32>
    %529 = vector.broadcast %528 : vector<1x128xf32> to vector<16x128xf32>
    %530 = arith.mulf %529, %495 : vector<16x128xf32>
    %531 = arith.addf %476, %530 : vector<16x128xf32>
    %c77 = arith.constant 77 : index
    %532 = memref.load %arg2[%c77] : memref<96xf32, #tpu.memory_space<smem>>
    %533 = vector.broadcast %532 : f32 to vector<1x128xf32>
    %534 = arith.addf %533, %0 : vector<1x128xf32>
    %535 = vector.broadcast %534 : vector<1x128xf32> to vector<16x128xf32>
    %536 = arith.mulf %535, %495 : vector<16x128xf32>
    %537 = arith.addf %482, %536 : vector<16x128xf32>
    %c89 = arith.constant 89 : index
    %538 = memref.load %arg2[%c89] : memref<96xf32, #tpu.memory_space<smem>>
    %539 = vector.broadcast %538 : f32 to vector<1x128xf32>
    %540 = arith.addf %539, %0 : vector<1x128xf32>
    %541 = vector.broadcast %540 : vector<1x128xf32> to vector<16x128xf32>
    %542 = arith.mulf %541, %495 : vector<16x128xf32>
    %543 = arith.addf %488, %542 : vector<16x128xf32>
    %c0_61 = arith.constant 0 : index
    %c2_62 = arith.constant 2 : index
    %c0_63 = arith.constant 0 : index
    %c0_64 = arith.constant 0 : index
    %544 = vector.load %arg3[%c0_61, %c2_62, %c0_63, %c0_64] : memref<1x4x16x128xf32, #tpu.memory_space<vmem>>, vector<1x1x16x128xf32>
    %545 = vector.shape_cast %544 : vector<1x1x16x128xf32> to vector<16x128xf32>
    %c127_i32_65 = arith.constant 127 : i32
    %546 = tpu.dynamic_rotate %545 by %c127_i32_65 dim 1 : vector<16x128xf32>, i32 -> vector<16x128xf32>
    %cst_66 = arith.constant 0.000000e+00 : f32
    %547 = vector.shape_cast %5 : vector<1x128xi1> to vector<1x128xi1>
    %548 = vector.broadcast %547 : vector<1x128xi1> to vector<16x128xi1>
    %549 = vector.broadcast %cst_66 : f32 to vector<16x128xf32>
    %550 = arith.select %548, %546, %549 : vector<16x128xi1>, vector<16x128xf32>
    %c8 = arith.constant 8 : index
    %551 = memref.load %arg2[%c8] : memref<96xf32, #tpu.memory_space<smem>>
    %552 = vector.broadcast %551 : f32 to vector<1x128xf32>
    %553 = arith.addf %552, %0 : vector<1x128xf32>
    %554 = vector.broadcast %553 : vector<1x128xf32> to vector<16x128xf32>
    %555 = arith.mulf %554, %550 : vector<16x128xf32>
    %556 = arith.addf %501, %555 : vector<16x128xf32>
    %c20 = arith.constant 20 : index
    %557 = memref.load %arg2[%c20] : memref<96xf32, #tpu.memory_space<smem>>
    %558 = vector.broadcast %557 : f32 to vector<1x128xf32>
    %559 = arith.addf %558, %0 : vector<1x128xf32>
    %560 = vector.broadcast %559 : vector<1x128xf32> to vector<16x128xf32>
    %561 = arith.mulf %560, %550 : vector<16x128xf32>
    %562 = arith.addf %507, %561 : vector<16x128xf32>
    %c32 = arith.constant 32 : index
    %563 = memref.load %arg2[%c32] : memref<96xf32, #tpu.memory_space<smem>>
    %564 = vector.broadcast %563 : f32 to vector<1x128xf32>
    %565 = arith.addf %564, %0 : vector<1x128xf32>
    %566 = vector.broadcast %565 : vector<1x128xf32> to vector<16x128xf32>
    %567 = arith.mulf %566, %550 : vector<16x128xf32>
    %568 = arith.addf %513, %567 : vector<16x128xf32>
    %c44 = arith.constant 44 : index
    %569 = memref.load %arg2[%c44] : memref<96xf32, #tpu.memory_space<smem>>
    %570 = vector.broadcast %569 : f32 to vector<1x128xf32>
    %571 = arith.addf %570, %0 : vector<1x128xf32>
    %572 = vector.broadcast %571 : vector<1x128xf32> to vector<16x128xf32>
    %573 = arith.mulf %572, %550 : vector<16x128xf32>
    %574 = arith.addf %519, %573 : vector<16x128xf32>
    %c56 = arith.constant 56 : index
    %575 = memref.load %arg2[%c56] : memref<96xf32, #tpu.memory_space<smem>>
    %576 = vector.broadcast %575 : f32 to vector<1x128xf32>
    %577 = arith.addf %576, %0 : vector<1x128xf32>
    %578 = vector.broadcast %577 : vector<1x128xf32> to vector<16x128xf32>
    %579 = arith.mulf %578, %550 : vector<16x128xf32>
    %580 = arith.addf %525, %579 : vector<16x128xf32>
    %c68 = arith.constant 68 : index
    %581 = memref.load %arg2[%c68] : memref<96xf32, #tpu.memory_space<smem>>
    %582 = vector.broadcast %581 : f32 to vector<1x128xf32>
    %583 = arith.addf %582, %0 : vector<1x128xf32>
    %584 = vector.broadcast %583 : vector<1x128xf32> to vector<16x128xf32>
    %585 = arith.mulf %584, %550 : vector<16x128xf32>
    %586 = arith.addf %531, %585 : vector<16x128xf32>
    %c80 = arith.constant 80 : index
    %587 = memref.load %arg2[%c80] : memref<96xf32, #tpu.memory_space<smem>>
    %588 = vector.broadcast %587 : f32 to vector<1x128xf32>
    %589 = arith.addf %588, %0 : vector<1x128xf32>
    %590 = vector.broadcast %589 : vector<1x128xf32> to vector<16x128xf32>
    %591 = arith.mulf %590, %550 : vector<16x128xf32>
    %592 = arith.addf %537, %591 : vector<16x128xf32>
    %c92 = arith.constant 92 : index
    %593 = memref.load %arg2[%c92] : memref<96xf32, #tpu.memory_space<smem>>
    %594 = vector.broadcast %593 : f32 to vector<1x128xf32>
    %595 = arith.addf %594, %0 : vector<1x128xf32>
    %596 = vector.broadcast %595 : vector<1x128xf32> to vector<16x128xf32>
    %597 = arith.mulf %596, %550 : vector<16x128xf32>
    %598 = arith.addf %543, %597 : vector<16x128xf32>
    %c0_67 = arith.constant 0 : index
    %c3_68 = arith.constant 3 : index
    %c0_69 = arith.constant 0 : index
    %c0_70 = arith.constant 0 : index
    %599 = vector.load %arg3[%c0_67, %c3_68, %c0_69, %c0_70] : memref<1x4x16x128xf32, #tpu.memory_space<vmem>>, vector<1x1x16x128xf32>
    %600 = vector.shape_cast %599 : vector<1x1x16x128xf32> to vector<16x128xf32>
    %c127_i32_71 = arith.constant 127 : i32
    %601 = tpu.dynamic_rotate %600 by %c127_i32_71 dim 1 : vector<16x128xf32>, i32 -> vector<16x128xf32>
    %cst_72 = arith.constant 0.000000e+00 : f32
    %602 = vector.shape_cast %5 : vector<1x128xi1> to vector<1x128xi1>
    %603 = vector.broadcast %602 : vector<1x128xi1> to vector<16x128xi1>
    %604 = vector.broadcast %cst_72 : f32 to vector<16x128xf32>
    %605 = arith.select %603, %601, %604 : vector<16x128xi1>, vector<16x128xf32>
    %c11 = arith.constant 11 : index
    %606 = memref.load %arg2[%c11] : memref<96xf32, #tpu.memory_space<smem>>
    %607 = vector.broadcast %606 : f32 to vector<1x128xf32>
    %608 = arith.addf %607, %0 : vector<1x128xf32>
    %609 = vector.broadcast %608 : vector<1x128xf32> to vector<16x128xf32>
    %610 = arith.mulf %609, %605 : vector<16x128xf32>
    %611 = arith.addf %556, %610 : vector<16x128xf32>
    %c23 = arith.constant 23 : index
    %612 = memref.load %arg2[%c23] : memref<96xf32, #tpu.memory_space<smem>>
    %613 = vector.broadcast %612 : f32 to vector<1x128xf32>
    %614 = arith.addf %613, %0 : vector<1x128xf32>
    %615 = vector.broadcast %614 : vector<1x128xf32> to vector<16x128xf32>
    %616 = arith.mulf %615, %605 : vector<16x128xf32>
    %617 = arith.addf %562, %616 : vector<16x128xf32>
    %c35 = arith.constant 35 : index
    %618 = memref.load %arg2[%c35] : memref<96xf32, #tpu.memory_space<smem>>
    %619 = vector.broadcast %618 : f32 to vector<1x128xf32>
    %620 = arith.addf %619, %0 : vector<1x128xf32>
    %621 = vector.broadcast %620 : vector<1x128xf32> to vector<16x128xf32>
    %622 = arith.mulf %621, %605 : vector<16x128xf32>
    %623 = arith.addf %568, %622 : vector<16x128xf32>
    %c47 = arith.constant 47 : index
    %624 = memref.load %arg2[%c47] : memref<96xf32, #tpu.memory_space<smem>>
    %625 = vector.broadcast %624 : f32 to vector<1x128xf32>
    %626 = arith.addf %625, %0 : vector<1x128xf32>
    %627 = vector.broadcast %626 : vector<1x128xf32> to vector<16x128xf32>
    %628 = arith.mulf %627, %605 : vector<16x128xf32>
    %629 = arith.addf %574, %628 : vector<16x128xf32>
    %c59 = arith.constant 59 : index
    %630 = memref.load %arg2[%c59] : memref<96xf32, #tpu.memory_space<smem>>
    %631 = vector.broadcast %630 : f32 to vector<1x128xf32>
    %632 = arith.addf %631, %0 : vector<1x128xf32>
    %633 = vector.broadcast %632 : vector<1x128xf32> to vector<16x128xf32>
    %634 = arith.mulf %633, %605 : vector<16x128xf32>
    %635 = arith.addf %580, %634 : vector<16x128xf32>
    %c71 = arith.constant 71 : index
    %636 = memref.load %arg2[%c71] : memref<96xf32, #tpu.memory_space<smem>>
    %637 = vector.broadcast %636 : f32 to vector<1x128xf32>
    %638 = arith.addf %637, %0 : vector<1x128xf32>
    %639 = vector.broadcast %638 : vector<1x128xf32> to vector<16x128xf32>
    %640 = arith.mulf %639, %605 : vector<16x128xf32>
    %641 = arith.addf %586, %640 : vector<16x128xf32>
    %c83 = arith.constant 83 : index
    %642 = memref.load %arg2[%c83] : memref<96xf32, #tpu.memory_space<smem>>
    %643 = vector.broadcast %642 : f32 to vector<1x128xf32>
    %644 = arith.addf %643, %0 : vector<1x128xf32>
    %645 = vector.broadcast %644 : vector<1x128xf32> to vector<16x128xf32>
    %646 = arith.mulf %645, %605 : vector<16x128xf32>
    %647 = arith.addf %592, %646 : vector<16x128xf32>
    %c95 = arith.constant 95 : index
    %648 = memref.load %arg2[%c95] : memref<96xf32, #tpu.memory_space<smem>>
    %649 = vector.broadcast %648 : f32 to vector<1x128xf32>
    %650 = arith.addf %649, %0 : vector<1x128xf32>
    %651 = vector.broadcast %650 : vector<1x128xf32> to vector<16x128xf32>
    %652 = arith.mulf %651, %605 : vector<16x128xf32>
    %653 = arith.addf %598, %652 : vector<16x128xf32>
    %c0_73 = arith.constant 0 : index
    %c0_74 = arith.constant 0 : index
    %c0_75 = arith.constant 0 : index
    %c0_76 = arith.constant 0 : index
    %654 = vector.load %arg5[%c0_73, %c0_74, %c0_75, %c0_76] : memref<1x8x16x128xf32, #tpu.memory_space<vmem>>, vector<1x1x16x128xf32>
    %655 = vector.shape_cast %654 : vector<1x1x16x128xf32> to vector<16x128xf32>
    %656 = vector.shape_cast %611 : vector<16x128xf32> to vector<1x1x16x128xf32>
    tpu.vector_store %arg5[%c0_73, %c0_74, %c0_75, %c0_76], %656 {strides = array<i32>} : memref<1x8x16x128xf32, #tpu.memory_space<vmem>>, vector<1x1x16x128xf32>,
    %c0_77 = arith.constant 0 : index
    %c1_78 = arith.constant 1 : index
    %c0_79 = arith.constant 0 : index
    %c0_80 = arith.constant 0 : index
    %657 = vector.load %arg5[%c0_77, %c1_78, %c0_79, %c0_80] : memref<1x8x16x128xf32, #tpu.memory_space<vmem>>, vector<1x1x16x128xf32>
    %658 = vector.shape_cast %657 : vector<1x1x16x128xf32> to vector<16x128xf32>
    %659 = vector.shape_cast %617 : vector<16x128xf32> to vector<1x1x16x128xf32>
    tpu.vector_store %arg5[%c0_77, %c1_78, %c0_79, %c0_80], %659 {strides = array<i32>} : memref<1x8x16x128xf32, #tpu.memory_space<vmem>>, vector<1x1x16x128xf32>,
    %c0_81 = arith.constant 0 : index
    %c2_82 = arith.constant 2 : index
    %c0_83 = arith.constant 0 : index
    %c0_84 = arith.constant 0 : index
    %660 = vector.load %arg5[%c0_81, %c2_82, %c0_83, %c0_84] : memref<1x8x16x128xf32, #tpu.memory_space<vmem>>, vector<1x1x16x128xf32>
    %661 = vector.shape_cast %660 : vector<1x1x16x128xf32> to vector<16x128xf32>
    %662 = vector.shape_cast %623 : vector<16x128xf32> to vector<1x1x16x128xf32>
    tpu.vector_store %arg5[%c0_81, %c2_82, %c0_83, %c0_84], %662 {strides = array<i32>} : memref<1x8x16x128xf32, #tpu.memory_space<vmem>>, vector<1x1x16x128xf32>,
    %c0_85 = arith.constant 0 : index
    %c3_86 = arith.constant 3 : index
    %c0_87 = arith.constant 0 : index
    %c0_88 = arith.constant 0 : index
    %663 = vector.load %arg5[%c0_85, %c3_86, %c0_87, %c0_88] : memref<1x8x16x128xf32, #tpu.memory_space<vmem>>, vector<1x1x16x128xf32>
    %664 = vector.shape_cast %663 : vector<1x1x16x128xf32> to vector<16x128xf32>
    %665 = vector.shape_cast %629 : vector<16x128xf32> to vector<1x1x16x128xf32>
    tpu.vector_store %arg5[%c0_85, %c3_86, %c0_87, %c0_88], %665 {strides = array<i32>} : memref<1x8x16x128xf32, #tpu.memory_space<vmem>>, vector<1x1x16x128xf32>,
    %c0_89 = arith.constant 0 : index
    %c4_90 = arith.constant 4 : index
    %c0_91 = arith.constant 0 : index
    %c0_92 = arith.constant 0 : index
    %666 = vector.load %arg5[%c0_89, %c4_90, %c0_91, %c0_92] : memref<1x8x16x128xf32, #tpu.memory_space<vmem>>, vector<1x1x16x128xf32>
    %667 = vector.shape_cast %666 : vector<1x1x16x128xf32> to vector<16x128xf32>
    %668 = vector.shape_cast %635 : vector<16x128xf32> to vector<1x1x16x128xf32>
    tpu.vector_store %arg5[%c0_89, %c4_90, %c0_91, %c0_92], %668 {strides = array<i32>} : memref<1x8x16x128xf32, #tpu.memory_space<vmem>>, vector<1x1x16x128xf32>,
    %c0_93 = arith.constant 0 : index
    %c5_94 = arith.constant 5 : index
    %c0_95 = arith.constant 0 : index
    %c0_96 = arith.constant 0 : index
    %669 = vector.load %arg5[%c0_93, %c5_94, %c0_95, %c0_96] : memref<1x8x16x128xf32, #tpu.memory_space<vmem>>, vector<1x1x16x128xf32>
    %670 = vector.shape_cast %669 : vector<1x1x16x128xf32> to vector<16x128xf32>
    %671 = vector.shape_cast %641 : vector<16x128xf32> to vector<1x1x16x128xf32>
    tpu.vector_store %arg5[%c0_93, %c5_94, %c0_95, %c0_96], %671 {strides = array<i32>} : memref<1x8x16x128xf32, #tpu.memory_space<vmem>>, vector<1x1x16x128xf32>,
    %c0_97 = arith.constant 0 : index
    %c6_98 = arith.constant 6 : index
    %c0_99 = arith.constant 0 : index
    %c0_100 = arith.constant 0 : index
    %672 = vector.load %arg5[%c0_97, %c6_98, %c0_99, %c0_100] : memref<1x8x16x128xf32, #tpu.memory_space<vmem>>, vector<1x1x16x128xf32>
    %673 = vector.shape_cast %672 : vector<1x1x16x128xf32> to vector<16x128xf32>
    %674 = vector.shape_cast %647 : vector<16x128xf32> to vector<1x1x16x128xf32>
    tpu.vector_store %arg5[%c0_97, %c6_98, %c0_99, %c0_100], %674 {strides = array<i32>} : memref<1x8x16x128xf32, #tpu.memory_space<vmem>>, vector<1x1x16x128xf32>,
    %c0_101 = arith.constant 0 : index
    %c7_102 = arith.constant 7 : index
    %c0_103 = arith.constant 0 : index
    %c0_104 = arith.constant 0 : index
    %675 = vector.load %arg5[%c0_101, %c7_102, %c0_103, %c0_104] : memref<1x8x16x128xf32, #tpu.memory_space<vmem>>, vector<1x1x16x128xf32>
    %676 = vector.shape_cast %675 : vector<1x1x16x128xf32> to vector<16x128xf32>
    %677 = vector.shape_cast %653 : vector<16x128xf32> to vector<1x1x16x128xf32>
    tpu.vector_store %arg5[%c0_101, %c7_102, %c0_103, %c0_104], %677 {strides = array<i32>} : memref<1x8x16x128xf32, #tpu.memory_space<vmem>>, vector<1x1x16x128xf32>,
    return
  }
  func.func @transform_0(%arg0: i32, %arg1: i32) -> i32 {
    %c0_i32 = arith.constant 0 : i32
    %c0_i32_0 = arith.constant 0 : i32
    return %c0_i32 : i32
  }
  func.func @transform_1(%arg0: i32, %arg1: i32) -> (i32, i32, i32, i32) {
    %c0_i32 = arith.constant 0 : i32
    %c0_i32_0 = arith.constant 0 : i32
    %c0_i32_1 = arith.constant 0 : i32
    return %arg0, %c0_i32, %arg1, %c0_i32_0 : i32, i32, i32, i32
  }
  func.func @transform_2(%arg0: i32, %arg1: i32) -> (i32, i32) {
    %c0_i32 = arith.constant 0 : i32
    %c0_i32_0 = arith.constant 0 : i32
    %c0_i32_1 = arith.constant 0 : i32
    return %c0_i32, %c0_i32_0 : i32, i32
  }
  func.func @transform_3(%arg0: i32, %arg1: i32) -> (i32, i32, i32, i32) {
    %c0_i32 = arith.constant 0 : i32
    %c0_i32_0 = arith.constant 0 : i32
    %c0_i32_1 = arith.constant 0 : i32
    return %arg0, %c0_i32, %arg1, %c0_i32_0 : i32, i32, i32, i32
  }
}

</mosaic_0001>

<llo_original>
// kernel: tpu_custom_call.1
$region0: #{tpu_custom_call.1}
  #allocation0 [shape = 'u32[]', space=smem, size = 0x4, offset = 0x4, fixed_abs, tag = 'smem constant byte address 0x4 - core index']
  #allocation1 [shape = 'u32[144,128]{1,0:T(1,128)}', space=vmem, size = 0x12000, scoped, tag = 'internal scratch']
  %s0 = inlined_call_operand.hbm [shape: f32[96], index: 0, kind: input, shape index: {}]
  %s1 = inlined_call_operand.hbm [shape: f32[2,4,16,128], index: 1, kind: input, shape index: {}]
  %s2 = inlined_call_operand.vmem [shape: f32[1,128], index: 2, kind: input, shape index: {}]
  %s3 = inlined_call_operand.hbm [shape: f32[2,8,16,128], index: 3, kind: output, shape index: {}]
  %s4 = sld [smem:[#allocation0]]
  $region53: #{tpu_custom_call.1} parent=0
    _
  %s6 = ssub.s32 1, %s4
  %s7 = scalar_select 0, %s6, %s4
  $region1: #{tpu_custom_call.1} parent=0
    #allocation2 [shape = 'u8[512]{0}', space=smem, size = 0x200, scoped, tag = 'input window, operand 0, single buffered']
    #allocation3 [shape = 's32[2]{0}', space=sflag, size = 0x8, scoped, tag = 'scoped memory for tpu_custom_call.1']
    #allocation4 [shape = 's32[2]{0}', space=sflag, size = 0x8, scoped, tag = 'scoped memory for tpu_custom_call.1']
    #allocation5 [shape = 's32[2]{0}', space=sflag, size = 0x8, scoped, tag = 'scoped memory for tpu_custom_call.1']
    #allocation6 [shape = 'u8[65536]{0}', space=vmem, size = 0x10000, scoped, tag = 'input window, operand 1']
    #allocation7 [shape = 'u8[131072]{0}', space=vmem, size = 0x20000, scoped, tag = 'output window, operand 0']
    %8 = vsyncpa [#allocation5], 0
    %9 = vsyncpa [#allocation3], 0
    %s10 = scalar_lea.sflag [#allocation3], 1
    %11 = vsyncpa %s10, 0
    %12 = vsyncpa [#allocation4], 0
    %s13 = scalar_lea.sflag [#allocation4], 1
    %14 = vsyncpa %s13, 0
    loop: start=0, step=1, limit=4
    $region2: #{tpu_custom_call.1} parent=1 // loop_pre_header
      _
    $region3: #{tpu_custom_call.1} parent=1 // loop_header
      %s16 = sphi 0, %s20
      %p17 = scmp.ge.s32.totalorder %s16, 4
      %s23 = sphi 0, %s35
      %s24 = sphi 0, %s31
      %s25 = sphi 0, %s23
      %s26 = sphi 0, %s24
      %s27 = sphi 0, %s25
      %s28 = sphi 0, %s26
      %s36 = sphi 0, %s36
      %s38 = sphi 0, %s36
      %s39 = sphi 0, %s38
      %s53 = sphi 0, %s39
      %s61 = sphi 0, %s63
      %s64 = sphi 0, %s61
      %s65 = sphi 0, %s64
      %s81 = sphi 0, %s65
      %s85 = sphi 0, %s85
      %s87 = sphi 0, %s85
      %s88 = sphi 0, %s87
      %s102 = sphi 0, %s88
      %s110 = sphi 0, %s112
      %s113 = sphi 0, %s110
      %s114 = sphi 0, %s113
      %s130 = sphi 0, %s114
    $region4: #{tpu_custom_call.1} parent=1 // loop_header_branch
      %19 = sbr.rel (%p17) target = $region8
    $region5: #{tpu_custom_call.1} parent=1 // loop_body
      %s21 = ssub.s32 %s16, 1
      %s22 = ssub.s32 %s16, 2
      %s29 = sadd.s32 1, %s24
      %p30 = scmp.ge.s32.totalorder %s29, 1
      %s31 = scalar_select %p30, 0, %s29
      %s32 = sadd.s32 1, %s23
      %s33 = scalar_select %p30, %s32, %s23
      %p34 = scmp.ge.s32.totalorder %s33, 2
      %s35 = scalar_select %p34, 0, %s33
      %s37 = sadd.s32 %s36, 1
      %p40 = scmp.eq.s32.totalorder %s16, 1
      %p41 = scmp.ne.s32.totalorder %s36, %s38
      %p42 = scmp.eq.s32.totalorder %s16, 0
      %p43 = por %p41, %p42
      %p44 = scmp.ne.s32.totalorder %s36, %s38
      %p45 = scmp.eq.s32.totalorder %s21, 1
      %p46 = por %p44, %p45
      %p47 = scmp.ne.s32.totalorder %s38, %s39
      %p48 = scmp.eq.s32.totalorder %s21, 0
      %p49 = por %p47, %p48
      %p50 = scmp.ne.s32.totalorder %s38, %s39
      %p51 = scmp.eq.s32.totalorder %s22, 1
      %p52 = por %p50, %p51
      %p54 = scmp.ne.s32.totalorder %s39, %s53
      %p55 = scmp.eq.s32.totalorder %s22, 0
      %p56 = por %p54, %p55
      %s57 = ssub.s32 %s23, %s35
      %s58 = ssub.s32 %s24, %s31
      %s59 = sor.u32 %s57, %s58
      %p60 = scmp.eq.s32.totalorder %s59, 0
      %s62 = sadd.s32 %s61, 1
      %s63 = scalar_select %p60, %s61, %s62
      %p66 = pneg %p60
      %p67 = scmp.eq.s32.totalorder %s16, 1
      %p68 = por %p66, %p67
      %p69 = scmp.ne.s32.totalorder %s61, %s64
      %p70 = scmp.eq.s32.totalorder %s16, 0
      %p71 = por %p69, %p70
      %p72 = scmp.ne.s32.totalorder %s61, %s64
      %p73 = scmp.eq.s32.totalorder %s21, 1
      %p74 = por %p72, %p73
      %p75 = scmp.ne.s32.totalorder %s64, %s65
      %p76 = scmp.eq.s32.totalorder %s21, 0
      %p77 = por %p75, %p76
      %p78 = scmp.ne.s32.totalorder %s64, %s65
      %p79 = scmp.eq.s32.totalorder %s22, 1
      %p80 = por %p78, %p79
      %p82 = scmp.ne.s32.totalorder %s65, %s81
      %p83 = scmp.eq.s32.totalorder %s22, 0
      %p84 = por %p82, %p83
      %s86 = sadd.s32 %s85, 1
      %p89 = scmp.eq.s32.totalorder %s16, 1
      %p90 = scmp.ne.s32.totalorder %s85, %s87
      %p91 = scmp.eq.s32.totalorder %s16, 0
      %p92 = por %p90, %p91
      %p93 = scmp.ne.s32.totalorder %s85, %s87
      %p94 = scmp.eq.s32.totalorder %s21, 1
      %p95 = por %p93, %p94
      %p96 = scmp.ne.s32.totalorder %s87, %s88
      %p97 = scmp.eq.s32.totalorder %s21, 0
      %p98 = por %p96, %p97
      %p99 = scmp.ne.s32.totalorder %s87, %s88
      %p100 = scmp.eq.s32.totalorder %s22, 1
      %p101 = por %p99, %p100
      %p103 = scmp.ne.s32.totalorder %s88, %s102
      %p104 = scmp.eq.s32.totalorder %s22, 0
      %p105 = por %p103, %p104
      %s106 = ssub.s32 %s23, %s35
      %s107 = ssub.s32 %s24, %s31
      %s108 = sor.u32 %s106, %s107
      %p109 = scmp.eq.s32.totalorder %s108, 0
      %s111 = sadd.s32 %s110, 1
      %s112 = scalar_select %p109, %s110, %s111
      %p115 = pneg %p109
      %p116 = scmp.eq.s32.totalorder %s16, 1
      %p117 = por %p115, %p116
      %p118 = scmp.ne.s32.totalorder %s110, %s113
      %p119 = scmp.eq.s32.totalorder %s16, 0
      %p120 = por %p118, %p119
      %p121 = scmp.ne.s32.totalorder %s110, %s113
      %p122 = scmp.eq.s32.totalorder %s21, 1
      %p123 = por %p121, %p122
      %p124 = scmp.ne.s32.totalorder %s113, %s114
      %p125 = scmp.eq.s32.totalorder %s21, 0
      %p126 = por %p124, %p125
      %p127 = scmp.ne.s32.totalorder %s113, %s114
      %p128 = scmp.eq.s32.totalorder %s22, 1
      %p129 = por %p127, %p128
      %p131 = scmp.ne.s32.totalorder %s114, %s130
      %p132 = scmp.eq.s32.totalorder %s22, 0
      %p133 = por %p131, %p132
      %p134 = scmp.le.s32.totalorder 1, %s16
      %p135 = scmp.lt.s32.totalorder %s16, 3
      %p136 = pnand %p134, %p135
      %p137 = pneg %p136
      // Predicated region
      $region9: #{tpu_custom_call.1} parent=5 // pred_check
        _
      $region10: #{tpu_custom_call.1} parent=5 // pred_check_branch
        %139 = sbr.rel (%p136) target = $region12
      $region11: #{tpu_custom_call.1} parent=5 // pred_region
        %s140 = ssub.s32 %s16, 1
        // Predicated region
        $region13: #{tpu_custom_call.1} parent=11 // pred_check
          %p141 = pneg %p49
        $region14: #{tpu_custom_call.1} parent=11 // pred_check_branch
          %143 = sbr.rel (%p141) target = $region16
        $region15: #{tpu_custom_call.1} parent=11 // pred_region
          %s145 = ssub.s32 16, 16
          %146 = vsyncadd [#allocation5], %s145
          %149 = dma.hbm_to_smem %s0, 16, [#allocation2], [#allocation5]
        $region16: #{tpu_custom_call.1} parent=11 // pred_fallthru
          _
        // Predicated region
        $region17: #{tpu_custom_call.1} parent=11 // pred_check
          %p150 = pneg %p98
        $region18: #{tpu_custom_call.1} parent=11 // pred_check_branch
          %152 = sbr.rel (%p150) target = $region20
        $region19: #{tpu_custom_call.1} parent=11 // pred_region
          _
        $region20: #{tpu_custom_call.1} parent=11 // pred_fallthru
          _
      $region12: #{tpu_custom_call.1} parent=5 // pred_fallthru
        _
      %p153 = scmp.lt.s32.totalorder %s16, 2
      // Predicated region
      $region21: #{tpu_custom_call.1} parent=5 // pred_check
        %p154 = pneg %p153
      $region22: #{tpu_custom_call.1} parent=5 // pred_check_branch
        %156 = sbr.rel (%p154) target = $region24
      $region23: #{tpu_custom_call.1} parent=5 // pred_region
        // Predicated region
        $region25: #{tpu_custom_call.1} parent=23 // pred_check
          %p157 = pneg %p71
        $region26: #{tpu_custom_call.1} parent=23 // pred_check_branch
          %159 = sbr.rel (%p157) target = $region28
        $region27: #{tpu_custom_call.1} parent=23 // pred_region
          %s160 = sand.u32 %s61, 1
          %s161 = scalar_lea.sflag [#allocation3], %s160
          %s162 = sand.u32 %s61, 1
          %s163 = smul.addr %s162, 64
          %s164 = scalar_lea.vmem [#allocation6], %s163
          %s165 = smul.u32 2, %s24
          %s167 = ssub.s32 1024, 1024
          %168 = vsyncadd %s161, %s167
          %s169 = smul.addr %s23, 8
          %s170 = sadd.s32 %s165, %s169
          %s171 = smul.addr %s170, 128
          %s172 = scalar_lea.hbm %s1, %s171
          %s173 = sshll.u32 %s164, 4
          %s174 = int_to_ptr.vmem [resolvable:$true] %s173
          %179 = dma.hbm_to_vmem [thread:$0]  %s172, 1024, %s174, %s161, 128, 128, 8
        $region28: #{tpu_custom_call.1} parent=23 // pred_fallthru
          _
      $region24: #{tpu_custom_call.1} parent=5 // pred_fallthru
        _
      %p180 = scmp.le.s32.totalorder 1, %s16
      %p181 = scmp.lt.s32.totalorder %s16, 3
      %p182 = pnand %p180, %p181
      %p183 = pneg %p182
      // Predicated region
      $region29: #{tpu_custom_call.1} parent=5 // pred_check
        _
      $region30: #{tpu_custom_call.1} parent=5 // pred_check_branch
        %185 = sbr.rel (%p182) target = $region32
      $region31: #{tpu_custom_call.1} parent=5 // pred_region
        %s186 = ssub.s32 %s16, 1
        // Predicated region
        $region33: #{tpu_custom_call.1} parent=31 // pred_check
          %p187 = pneg %p49
        $region34: #{tpu_custom_call.1} parent=31 // pred_check_branch
          %189 = sbr.rel (%p187) target = $region36
        $region35: #{tpu_custom_call.1} parent=31 // pred_region
          %190 = dma.done [#allocation5], 16
        $region36: #{tpu_custom_call.1} parent=31 // pred_fallthru
          _
        %s191 = sand.u32 %s64, 1
        %s192 = scalar_lea.sflag [#allocation3], %s191
        %s193 = sand.u32 %s64, 1
        %s194 = smul.addr %s193, 64
        %s195 = scalar_lea.vmem [#allocation6], %s194
        // Predicated region
        $region37: #{tpu_custom_call.1} parent=31 // pred_check
          %p196 = pneg %p77
        $region38: #{tpu_custom_call.1} parent=31 // pred_check_branch
          %198 = sbr.rel (%p196) target = $region40
        $region39: #{tpu_custom_call.1} parent=31 // pred_region
          %199 = dma.done %s192, 1024
        $region40: #{tpu_custom_call.1} parent=31 // pred_fallthru
          _
        %200 = sfence
        %p201 = pneg %p49
        %p202 = pneg %p46
        %s203 = sand.u32 %s64, 1
        %s204 = scalar_lea.sflag [#allocation3], %s203
        %s205 = sand.u32 %s64, 1
        %s206 = smul.addr %s205, 64
        %s207 = scalar_lea.vmem [#allocation6], %s206
        %p208 = pneg %p77
        %p209 = pneg %p74
        %p210 = pneg %p98
        %p211 = pneg %p95
        %p212 = pneg %p126
        %p213 = pneg %p123
        %s214 = sand.u32 %s113, 1
        %s215 = scalar_lea.sflag [#allocation4], %s214
        %s216 = sand.u32 %s113, 1
        %s217 = smul.addr %s216, 128
        %s218 = scalar_lea.vmem [#allocation7], %s217
        %s219 = smul.u32 2, %s26
        %s220 = smul.u32 2, %s26
        %v221 = vld [vmem:[%s2] sm:$0x1]
        %v222 = vlaneseq
        %v223 = vand.u32 %v222, 127
        %vm224 = vcmp.ge.s32.totalorder %v223, 1
        %vm225 = vcmp.lt.s32.totalorder %v223, 127
        %v226 = vld [vmem:[%s195] sm:$0xff]
        %v227 = vld [vmem:[%s195 + $0x8] sm:$0xff]
        %228 = vrot.lane.b32.xlu0 %v226, 1
        %v229 = vpop.permute.xlu0 %228
        %230 = vrot.lane.b32.xlu0 %v227, 1
        %v231 = vpop.permute.xlu0 %230
        %v232 = vsel %vm224, 1, 0
        %vm233 = vcmp.eq.s32.totalorder %v232, 1
        %v234 = vsel %vm233, %v229, 0.0
        %v235 = vsel %vm233, %v231, 0.0
        %s236 = sld [smem:[#allocation2]]
        %v237 = vstv %s236
        %v238 = vadd.f32 %v237, %v221
        %v240 = vlaneseq
        %v241 = vshrl.u32 %v240, 7
        %v242 = vsub.s32 0, %v241
        %v243 = vrot.slane %v238, %v242
        %v245 = vmul.f32 %v243, %v234
        %v246 = vmul.f32 %v243, %v235
        %v247 = vadd.f32 %v245, 0.0
        %v248 = vadd.f32 %v246, 0.0
        %s249 = sld [smem:[#allocation2 + $0xc]]
        %v250 = vstv %s249
        %v251 = vadd.f32 %v250, %v221
        %v253 = vlaneseq
        %v254 = vshrl.u32 %v253, 7
        %v255 = vsub.s32 0, %v254
        %v256 = vrot.slane %v251, %v255
        %v258 = vmul.f32 %v256, %v234
        %v259 = vmul.f32 %v256, %v235
        %v260 = vadd.f32 %v258, 0.0
        %v261 = vadd.f32 %v259, 0.0
        %s262 = sld [smem:[#allocation2 + $0x18]]
        %v263 = vstv %s262
        %v264 = vadd.f32 %v263, %v221
        %v266 = vlaneseq
        %v267 = vshrl.u32 %v266, 7
        %v268 = vsub.s32 0, %v267
        %v269 = vrot.slane %v264, %v268
        %v271 = vmul.f32 %v269, %v234
        %v272 = vmul.f32 %v269, %v235
        %v273 = vadd.f32 %v271, 0.0
        %v274 = vadd.f32 %v272, 0.0
        %s275 = sld [smem:[#allocation2 + $0x24]]
        %v276 = vstv %s275
        %v277 = vadd.f32 %v276, %v221
        %v279 = vlaneseq
        %v280 = vshrl.u32 %v279, 7
        %v281 = vsub.s32 0, %v280
        %v282 = vrot.slane %v277, %v281
        %v284 = vmul.f32 %v282, %v234
        %v285 = vmul.f32 %v282, %v235
        %v286 = vadd.f32 %v284, 0.0
        %v287 = vadd.f32 %v285, 0.0
        %s288 = sld [smem:[#allocation2 + $0x30]]
        %v289 = vstv %s288
        %v290 = vadd.f32 %v289, %v221
        %v292 = vlaneseq
        %v293 = vshrl.u32 %v292, 7
        %v294 = vsub.s32 0, %v293
        %v295 = vrot.slane %v290, %v294
        %v297 = vmul.f32 %v295, %v234
        %v298 = vmul.f32 %v295, %v235
        %v299 = vadd.f32 %v297, 0.0
        %v300 = vadd.f32 %v298, 0.0
        %s301 = sld [smem:[#allocation2 + $0x3c]]
        %v302 = vstv %s301
        %v303 = vadd.f32 %v302, %v221
        %v305 = vlaneseq
        %v306 = vshrl.u32 %v305, 7
        %v307 = vsub.s32 0, %v306
        %v308 = vrot.slane %v303, %v307
        %v310 = vmul.f32 %v308, %v234
        %v311 = vmul.f32 %v308, %v235
        %v312 = vadd.f32 %v310, 0.0
        %v313 = vadd.f32 %v311, 0.0
        %s314 = sld [smem:[#allocation2 + $0x48]]
        %v315 = vstv %s314
        %v316 = vadd.f32 %v315, %v221
        %v318 = vlaneseq
        %v319 = vshrl.u32 %v318, 7
        %v320 = vsub.s32 0, %v319
        %v321 = vrot.slane %v316, %v320
        %v323 = vmul.f32 %v321, %v234
        %v324 = vmul.f32 %v321, %v235
        %v325 = vadd.f32 %v323, 0.0
        %v326 = vadd.f32 %v324, 0.0
        %s327 = sld [smem:[#allocation2 + $0x54]]
        %v328 = vstv %s327
        %v329 = vadd.f32 %v328, %v221
        %v331 = vlaneseq
        %v332 = vshrl.u32 %v331, 7
        %v333 = vsub.s32 0, %v332
        %v334 = vrot.slane %v329, %v333
        %v336 = vmul.f32 %v334, %v234
        %v337 = vmul.f32 %v334, %v235
        %v338 = vadd.f32 %v336, 0.0
        %v339 = vadd.f32 %v337, 0.0
        %s340 = scalar_lea.vmem %s195, 16 [#allocation6]
        %v341 = vld [vmem:[%s340] sm:$0xff]
        %v342 = vld [vmem:[%s340 + $0x8] sm:$0xff]
        %343 = vrot.lane.b32.xlu0 %v341, 1
        %v344 = vpop.permute.xlu0 %343
        %345 = vrot.lane.b32.xlu0 %v342, 1
        %v346 = vpop.permute.xlu0 %345
        %v347 = vsel %vm233, %v344, 0.0
        %v348 = vsel %vm233, %v346, 0.0
        %s349 = sld [smem:[#allocation2 + $0x3]]
        %v350 = vstv %s349
        %v351 = vadd.f32 %v350, %v221
        %v353 = vlaneseq
        %v354 = vshrl.u32 %v353, 7
        %v355 = vsub.s32 0, %v354
        %v356 = vrot.slane %v351, %v355
        %v358 = vmul.f32 %v356, %v347
        %v359 = vmul.f32 %v356, %v348
        %v360 = vadd.f32 %v247, %v358
        %v361 = vadd.f32 %v248, %v359
        %s362 = sld [smem:[#allocation2 + $0xf]]
        %v363 = vstv %s362
        %v364 = vadd.f32 %v363, %v221
        %v366 = vlaneseq
        %v367 = vshrl.u32 %v366, 7
        %v368 = vsub.s32 0, %v367
        %v369 = vrot.slane %v364, %v368
        %v371 = vmul.f32 %v369, %v347
        %v372 = vmul.f32 %v369, %v348
        %v373 = vadd.f32 %v260, %v371
        %v374 = vadd.f32 %v261, %v372
        %s375 = sld [smem:[#allocation2 + $0x1b]]
        %v376 = vstv %s375
        %v377 = vadd.f32 %v376, %v221
        %v379 = vlaneseq
        %v380 = vshrl.u32 %v379, 7
        %v381 = vsub.s32 0, %v380
        %v382 = vrot.slane %v377, %v381
        %v384 = vmul.f32 %v382, %v347
        %v385 = vmul.f32 %v382, %v348
        %v386 = vadd.f32 %v273, %v384
        %v387 = vadd.f32 %v274, %v385
        %s388 = sld [smem:[#allocation2 + $0x27]]
        %v389 = vstv %s388
        %v390 = vadd.f32 %v389, %v221
        %v392 = vlaneseq
        %v393 = vshrl.u32 %v392, 7
        %v394 = vsub.s32 0, %v393
        %v395 = vrot.slane %v390, %v394
        %v397 = vmul.f32 %v395, %v347
        %v398 = vmul.f32 %v395, %v348
        %v399 = vadd.f32 %v286, %v397
        %v400 = vadd.f32 %v287, %v398
        %s401 = sld [smem:[#allocation2 + $0x33]]
        %v402 = vstv %s401
        %v403 = vadd.f32 %v402, %v221
        %v405 = vlaneseq
        %v406 = vshrl.u32 %v405, 7
        %v407 = vsub.s32 0, %v406
        %v408 = vrot.slane %v403, %v407
        %v410 = vmul.f32 %v408, %v347
        %v411 = vmul.f32 %v408, %v348
        %v412 = vadd.f32 %v299, %v410
        %v413 = vadd.f32 %v300, %v411
        %s414 = sld [smem:[#allocation2 + $0x3f]]
        %v415 = vstv %s414
        %v416 = vadd.f32 %v415, %v221
        %v418 = vlaneseq
        %v419 = vshrl.u32 %v418, 7
        %v420 = vsub.s32 0, %v419
        %v421 = vrot.slane %v416, %v420
        %v423 = vmul.f32 %v421, %v347
        %v424 = vmul.f32 %v421, %v348
        %v425 = vadd.f32 %v312, %v423
        %v426 = vadd.f32 %v313, %v424
        %s427 = sld [smem:[#allocation2 + $0x4b]]
        %v428 = vstv %s427
        %v429 = vadd.f32 %v428, %v221
        %v431 = vlaneseq
        %v432 = vshrl.u32 %v431, 7
        %v433 = vsub.s32 0, %v432
        %v434 = vrot.slane %v429, %v433
        %v436 = vmul.f32 %v434, %v347
        %v437 = vmul.f32 %v434, %v348
        %v438 = vadd.f32 %v325, %v436
        %v439 = vadd.f32 %v326, %v437
        %s440 = sld [smem:[#allocation2 + $0x57]]
        %v441 = vstv %s440
        %v442 = vadd.f32 %v441, %v221
        %v444 = vlaneseq
        %v445 = vshrl.u32 %v444, 7
        %v446 = vsub.s32 0, %v445
        %v447 = vrot.slane %v442, %v446
        %v449 = vmul.f32 %v447, %v347
        %v450 = vmul.f32 %v447, %v348
        %v451 = vadd.f32 %v338, %v449
        %v452 = vadd.f32 %v339, %v450
        %s453 = scalar_lea.vmem %s195, 32 [#allocation6]
        %v454 = vld [vmem:[%s453] sm:$0xff]
        %v455 = vld [vmem:[%s453 + $0x8] sm:$0xff]
        %456 = vrot.lane.b32.xlu0 %v454, 1
        %v457 = vpop.permute.xlu0 %456
        %458 = vrot.lane.b32.xlu0 %v455, 1
        %v459 = vpop.permute.xlu0 %458
        %v460 = vsel %vm233, %v457, 0.0
        %v461 = vsel %vm233, %v459, 0.0
        %s462 = sld [smem:[#allocation2 + $0x6]]
        %v463 = vstv %s462
        %v464 = vadd.f32 %v463, %v221
        %v466 = vlaneseq
        %v467 = vshrl.u32 %v466, 7
        %v468 = vsub.s32 0, %v467
        %v469 = vrot.slane %v464, %v468
        %v471 = vmul.f32 %v469, %v460
        %v472 = vmul.f32 %v469, %v461
        %v473 = vadd.f32 %v360, %v471
        %v474 = vadd.f32 %v361, %v472
        %s475 = sld [smem:[#allocation2 + $0x12]]
        %v476 = vstv %s475
        %v477 = vadd.f32 %v476, %v221
        %v479 = vlaneseq
        %v480 = vshrl.u32 %v479, 7
        %v481 = vsub.s32 0, %v480
        %v482 = vrot.slane %v477, %v481
        %v484 = vmul.f32 %v482, %v460
        %v485 = vmul.f32 %v482, %v461
        %v486 = vadd.f32 %v373, %v484
        %v487 = vadd.f32 %v374, %v485
        %s488 = sld [smem:[#allocation2 + $0x1e]]
        %v489 = vstv %s488
        %v490 = vadd.f32 %v489, %v221
        %v492 = vlaneseq
        %v493 = vshrl.u32 %v492, 7
        %v494 = vsub.s32 0, %v493
        %v495 = vrot.slane %v490, %v494
        %v497 = vmul.f32 %v495, %v460
        %v498 = vmul.f32 %v495, %v461
        %v499 = vadd.f32 %v386, %v497
        %v500 = vadd.f32 %v387, %v498
        %s501 = sld [smem:[#allocation2 + $0x2a]]
        %v502 = vstv %s501
        %v503 = vadd.f32 %v502, %v221
        %v505 = vlaneseq
        %v506 = vshrl.u32 %v505, 7
        %v507 = vsub.s32 0, %v506
        %v508 = vrot.slane %v503, %v507
        %v510 = vmul.f32 %v508, %v460
        %v511 = vmul.f32 %v508, %v461
        %v512 = vadd.f32 %v399, %v510
        %v513 = vadd.f32 %v400, %v511
        %s514 = sld [smem:[#allocation2 + $0x36]]
        %v515 = vstv %s514
        %v516 = vadd.f32 %v515, %v221
        %v518 = vlaneseq
        %v519 = vshrl.u32 %v518, 7
        %v520 = vsub.s32 0, %v519
        %v521 = vrot.slane %v516, %v520
        %v523 = vmul.f32 %v521, %v460
        %v524 = vmul.f32 %v521, %v461
        %v525 = vadd.f32 %v412, %v523
        %v526 = vadd.f32 %v413, %v524
        %s527 = sld [smem:[#allocation2 + $0x42]]
        %v528 = vstv %s527
        %v529 = vadd.f32 %v528, %v221
        %v531 = vlaneseq
        %v532 = vshrl.u32 %v531, 7
        %v533 = vsub.s32 0, %v532
        %v534 = vrot.slane %v529, %v533
        %v536 = vmul.f32 %v534, %v460
        %v537 = vmul.f32 %v534, %v461
        %v538 = vadd.f32 %v425, %v536
        %v539 = vadd.f32 %v426, %v537
        %s540 = sld [smem:[#allocation2 + $0x4e]]
        %v541 = vstv %s540
        %v542 = vadd.f32 %v541, %v221
        %v544 = vlaneseq
        %v545 = vshrl.u32 %v544, 7
        %v546 = vsub.s32 0, %v545
        %v547 = vrot.slane %v542, %v546
        %v549 = vmul.f32 %v547, %v460
        %v550 = vmul.f32 %v547, %v461
        %v551 = vadd.f32 %v438, %v549
        %v552 = vadd.f32 %v439, %v550
        %s553 = sld [smem:[#allocation2 + $0x5a]]
        %v554 = vstv %s553
        %v555 = vadd.f32 %v554, %v221
        %v557 = vlaneseq
        %v558 = vshrl.u32 %v557, 7
        %v559 = vsub.s32 0, %v558
        %v560 = vrot.slane %v555, %v559
        %v562 = vmul.f32 %v560, %v460
        %v563 = vmul.f32 %v560, %v461
        %v564 = vadd.f32 %v451, %v562
        %v565 = vadd.f32 %v452, %v563
        %s566 = scalar_lea.vmem %s195, 48 [#allocation6]
        %v567 = vld [vmem:[%s566] sm:$0xff]
        %v568 = vld [vmem:[%s566 + $0x8] sm:$0xff]
        %569 = vrot.lane.b32.xlu0 %v567, 1
        %v570 = vpop.permute.xlu0 %569
        %571 = vrot.lane.b32.xlu0 %v568, 1
        %v572 = vpop.permute.xlu0 %571
        %v573 = vsel %vm233, %v570, 0.0
        %v574 = vsel %vm233, %v572, 0.0
        %s575 = sld [smem:[#allocation2 + $0x9]]
        %v576 = vstv %s575
        %v577 = vadd.f32 %v576, %v221
        %v579 = vlaneseq
        %v580 = vshrl.u32 %v579, 7
        %v581 = vsub.s32 0, %v580
        %v582 = vrot.slane %v577, %v581
        %v584 = vmul.f32 %v582, %v573
        %v585 = vmul.f32 %v582, %v574
        %v586 = vadd.f32 %v473, %v584
        %v587 = vadd.f32 %v474, %v585
        %s588 = sld [smem:[#allocation2 + $0x15]]
        %v589 = vstv %s588
        %v590 = vadd.f32 %v589, %v221
        %v592 = vlaneseq
        %v593 = vshrl.u32 %v592, 7
        %v594 = vsub.s32 0, %v593
        %v595 = vrot.slane %v590, %v594
        %v597 = vmul.f32 %v595, %v573
        %v598 = vmul.f32 %v595, %v574
        %v599 = vadd.f32 %v486, %v597
        %v600 = vadd.f32 %v487, %v598
        %s601 = sld [smem:[#allocation2 + $0x21]]
        %v602 = vstv %s601
        %v603 = vadd.f32 %v602, %v221
        %v605 = vlaneseq
        %v606 = vshrl.u32 %v605, 7
        %v607 = vsub.s32 0, %v606
        %v608 = vrot.slane %v603, %v607
        %v610 = vmul.f32 %v608, %v573
        %v611 = vmul.f32 %v608, %v574
        %v612 = vadd.f32 %v499, %v610
        %v613 = vadd.f32 %v500, %v611
        %s614 = sld [smem:[#allocation2 + $0x2d]]
        %v615 = vstv %s614
        %v616 = vadd.f32 %v615, %v221
        %v618 = vlaneseq
        %v619 = vshrl.u32 %v618, 7
        %v620 = vsub.s32 0, %v619
        %v621 = vrot.slane %v616, %v620
        %v623 = vmul.f32 %v621, %v573
        %v624 = vmul.f32 %v621, %v574
        %v625 = vadd.f32 %v512, %v623
        %v626 = vadd.f32 %v513, %v624
        %s627 = sld [smem:[#allocation2 + $0x39]]
        %v628 = vstv %s627
        %v629 = vadd.f32 %v628, %v221
        %v631 = vlaneseq
        %v632 = vshrl.u32 %v631, 7
        %v633 = vsub.s32 0, %v632
        %v634 = vrot.slane %v629, %v633
        %v636 = vmul.f32 %v634, %v573
        %v637 = vmul.f32 %v634, %v574
        %v638 = vadd.f32 %v525, %v636
        %v639 = vadd.f32 %v526, %v637
        %s640 = sld [smem:[#allocation2 + $0x45]]
        %v641 = vstv %s640
        %v642 = vadd.f32 %v641, %v221
        %v644 = vlaneseq
        %v645 = vshrl.u32 %v644, 7
        %v646 = vsub.s32 0, %v645
        %v647 = vrot.slane %v642, %v646
        %v649 = vmul.f32 %v647, %v573
        %v650 = vmul.f32 %v647, %v574
        %v651 = vadd.f32 %v538, %v649
        %v652 = vadd.f32 %v539, %v650
        %s653 = sld [smem:[#allocation2 + $0x51]]
        %v654 = vstv %s653
        %v655 = vadd.f32 %v654, %v221
        %v657 = vlaneseq
        %v658 = vshrl.u32 %v657, 7
        %v659 = vsub.s32 0, %v658
        %v660 = vrot.slane %v655, %v659
        %v662 = vmul.f32 %v660, %v573
        %v663 = vmul.f32 %v660, %v574
        %v664 = vadd.f32 %v551, %v662
        %v665 = vadd.f32 %v552, %v663
        %s666 = sld [smem:[#allocation2 + $0x5d]]
        %v667 = vstv %s666
        %v668 = vadd.f32 %v667, %v221
        %v670 = vlaneseq
        %v671 = vshrl.u32 %v670, 7
        %v672 = vsub.s32 0, %v671
        %v673 = vrot.slane %v668, %v672
        %v675 = vmul.f32 %v673, %v573
        %v676 = vmul.f32 %v673, %v574
        %v677 = vadd.f32 %v564, %v675
        %v678 = vadd.f32 %v565, %v676
        %s679 = sld [smem:[#allocation2 + $0x1]]
        %v680 = vstv %s679
        %v681 = vadd.f32 %v680, %v221
        %v683 = vlaneseq
        %v684 = vshrl.u32 %v683, 7
        %v685 = vsub.s32 0, %v684
        %v686 = vrot.slane %v681, %v685
        %v688 = vmul.f32 %v686, %v226
        %v689 = vmul.f32 %v686, %v227
        %v690 = vadd.f32 %v586, %v688
        %v691 = vadd.f32 %v587, %v689
        %s692 = sld [smem:[#allocation2 + $0xd]]
        %v693 = vstv %s692
        %v694 = vadd.f32 %v693, %v221
        %v696 = vlaneseq
        %v697 = vshrl.u32 %v696, 7
        %v698 = vsub.s32 0, %v697
        %v699 = vrot.slane %v694, %v698
        %v701 = vmul.f32 %v699, %v226
        %v702 = vmul.f32 %v699, %v227
        %v703 = vadd.f32 %v599, %v701
        %v704 = vadd.f32 %v600, %v702
        %s705 = sld [smem:[#allocation2 + $0x19]]
        %v706 = vstv %s705
        %v707 = vadd.f32 %v706, %v221
        %v709 = vlaneseq
        %v710 = vshrl.u32 %v709, 7
        %v711 = vsub.s32 0, %v710
        %v712 = vrot.slane %v707, %v711
        %v714 = vmul.f32 %v712, %v226
        %v715 = vmul.f32 %v712, %v227
        %v716 = vadd.f32 %v612, %v714
        %v717 = vadd.f32 %v613, %v715
        %s718 = sld [smem:[#allocation2 + $0x25]]
        %v719 = vstv %s718
        %v720 = vadd.f32 %v719, %v221
        %v722 = vlaneseq
        %v723 = vshrl.u32 %v722, 7
        %v724 = vsub.s32 0, %v723
        %v725 = vrot.slane %v720, %v724
        %v727 = vmul.f32 %v725, %v226
        %v728 = vmul.f32 %v725, %v227
        %v729 = vadd.f32 %v625, %v727
        %v730 = vadd.f32 %v626, %v728
        %s731 = sld [smem:[#allocation2 + $0x31]]
        %v732 = vstv %s731
        %v733 = vadd.f32 %v732, %v221
        %v735 = vlaneseq
        %v736 = vshrl.u32 %v735, 7
        %v737 = vsub.s32 0, %v736
        %v738 = vrot.slane %v733, %v737
        %v740 = vmul.f32 %v738, %v226
        %v741 = vmul.f32 %v738, %v227
        %v742 = vadd.f32 %v638, %v740
        %v743 = vadd.f32 %v639, %v741
        %s744 = sld [smem:[#allocation2 + $0x3d]]
        %v745 = vstv %s744
        %v746 = vadd.f32 %v745, %v221
        %v748 = vlaneseq
        %v749 = vshrl.u32 %v748, 7
        %v750 = vsub.s32 0, %v749
        %v751 = vrot.slane %v746, %v750
        %v753 = vmul.f32 %v751, %v226
        %v754 = vmul.f32 %v751, %v227
        %v755 = vadd.f32 %v651, %v753
        %v756 = vadd.f32 %v652, %v754
        %s757 = sld [smem:[#allocation2 + $0x49]]
        %v758 = vstv %s757
        %v759 = vadd.f32 %v758, %v221
        %v761 = vlaneseq
        %v762 = vshrl.u32 %v761, 7
        %v763 = vsub.s32 0, %v762
        %v764 = vrot.slane %v759, %v763
        %v766 = vmul.f32 %v764, %v226
        %v767 = vmul.f32 %v764, %v227
        %v768 = vadd.f32 %v664, %v766
        %v769 = vadd.f32 %v665, %v767
        %s770 = sld [smem:[#allocation2 + $0x55]]
        %v771 = vstv %s770
        %v772 = vadd.f32 %v771, %v221
        %v774 = vlaneseq
        %v775 = vshrl.u32 %v774, 7
        %v776 = vsub.s32 0, %v775
        %v777 = vrot.slane %v772, %v776
        %v779 = vmul.f32 %v777, %v226
        %v780 = vmul.f32 %v777, %v227
        %v781 = vadd.f32 %v677, %v779
        %v782 = vadd.f32 %v678, %v780
        %s783 = sld [smem:[#allocation2 + $0x4]]
        %v784 = vstv %s783
        %v785 = vadd.f32 %v784, %v221
        %v787 = vlaneseq
        %v788 = vshrl.u32 %v787, 7
        %v789 = vsub.s32 0, %v788
        %v790 = vrot.slane %v785, %v789
        %v792 = vmul.f32 %v790, %v341
        %v793 = vmul.f32 %v790, %v342
        %v794 = vadd.f32 %v690, %v792
        %v795 = vadd.f32 %v691, %v793
        %s796 = sld [smem:[#allocation2 + $0x10]]
        %v797 = vstv %s796
        %v798 = vadd.f32 %v797, %v221
        %v800 = vlaneseq
        %v801 = vshrl.u32 %v800, 7
        %v802 = vsub.s32 0, %v801
        %v803 = vrot.slane %v798, %v802
        %v805 = vmul.f32 %v803, %v341
        %v806 = vmul.f32 %v803, %v342
        %v807 = vadd.f32 %v703, %v805
        %v808 = vadd.f32 %v704, %v806
        %s809 = sld [smem:[#allocation2 + $0x1c]]
        %v810 = vstv %s809
        %v811 = vadd.f32 %v810, %v221
        %v813 = vlaneseq
        %v814 = vshrl.u32 %v813, 7
        %v815 = vsub.s32 0, %v814
        %v816 = vrot.slane %v811, %v815
        %v818 = vmul.f32 %v816, %v341
        %v819 = vmul.f32 %v816, %v342
        %v820 = vadd.f32 %v716, %v818
        %v821 = vadd.f32 %v717, %v819
        %s822 = sld [smem:[#allocation2 + $0x28]]
        %v823 = vstv %s822
        %v824 = vadd.f32 %v823, %v221
        %v826 = vlaneseq
        %v827 = vshrl.u32 %v826, 7
        %v828 = vsub.s32 0, %v827
        %v829 = vrot.slane %v824, %v828
        %v831 = vmul.f32 %v829, %v341
        %v832 = vmul.f32 %v829, %v342
        %v833 = vadd.f32 %v729, %v831
        %v834 = vadd.f32 %v730, %v832
        %s835 = sld [smem:[#allocation2 + $0x34]]
        %v836 = vstv %s835
        %v837 = vadd.f32 %v836, %v221
        %v839 = vlaneseq
        %v840 = vshrl.u32 %v839, 7
        %v841 = vsub.s32 0, %v840
        %v842 = vrot.slane %v837, %v841
        %v844 = vmul.f32 %v842, %v341
        %v845 = vmul.f32 %v842, %v342
        %v846 = vadd.f32 %v742, %v844
        %v847 = vadd.f32 %v743, %v845
        %s848 = sld [smem:[#allocation2 + $0x40]]
        %v849 = vstv %s848
        %v850 = vadd.f32 %v849, %v221
        %v852 = vlaneseq
        %v853 = vshrl.u32 %v852, 7
        %v854 = vsub.s32 0, %v853
        %v855 = vrot.slane %v850, %v854
        %v857 = vmul.f32 %v855, %v341
        %v858 = vmul.f32 %v855, %v342
        %v859 = vadd.f32 %v755, %v857
        %v860 = vadd.f32 %v756, %v858
        %s861 = sld [smem:[#allocation2 + $0x4c]]
        %v862 = vstv %s861
        %v863 = vadd.f32 %v862, %v221
        %v865 = vlaneseq
        %v866 = vshrl.u32 %v865, 7
        %v867 = vsub.s32 0, %v866
        %v868 = vrot.slane %v863, %v867
        %v870 = vmul.f32 %v868, %v341
        %v871 = vmul.f32 %v868, %v342
        %v872 = vadd.f32 %v768, %v870
        %v873 = vadd.f32 %v769, %v871
        %s874 = sld [smem:[#allocation2 + $0x58]]
        %v875 = vstv %s874
        %v876 = vadd.f32 %v875, %v221
        %v878 = vlaneseq
        %v879 = vshrl.u32 %v878, 7
        %v880 = vsub.s32 0, %v879
        %v881 = vrot.slane %v876, %v880
        %v883 = vmul.f32 %v881, %v341
        %v884 = vmul.f32 %v881, %v342
        %v885 = vadd.f32 %v781, %v883
        %v886 = vadd.f32 %v782, %v884
        %s887 = sld [smem:[#allocation2 + $0x7]]
        %v888 = vstv %s887
        %v889 = vadd.f32 %v888, %v221
        %v891 = vlaneseq
        %v892 = vshrl.u32 %v891, 7
        %v893 = vsub.s32 0, %v892
        %v894 = vrot.slane %v889, %v893
        %v896 = vmul.f32 %v894, %v454
        %v897 = vmul.f32 %v894, %v455
        %v898 = vadd.f32 %v794, %v896
        %v899 = vadd.f32 %v795, %v897
        %s900 = sld [smem:[#allocation2 + $0x13]]
        %v901 = vstv %s900
        %v902 = vadd.f32 %v901, %v221
        %v904 = vlaneseq
        %v905 = vshrl.u32 %v904, 7
        %v906 = vsub.s32 0, %v905
        %v907 = vrot.slane %v902, %v906
        %v909 = vmul.f32 %v907, %v454
        %v910 = vmul.f32 %v907, %v455
        %v911 = vadd.f32 %v807, %v909
        %v912 = vadd.f32 %v808, %v910
        %s913 = sld [smem:[#allocation2 + $0x1f]]
        %v914 = vstv %s913
        %v915 = vadd.f32 %v914, %v221
        %v917 = vlaneseq
        %v918 = vshrl.u32 %v917, 7
        %v919 = vsub.s32 0, %v918
        %v920 = vrot.slane %v915, %v919
        %v922 = vmul.f32 %v920, %v454
        %v923 = vmul.f32 %v920, %v455
        %v924 = vadd.f32 %v820, %v922
        %v925 = vadd.f32 %v821, %v923
        %s926 = sld [smem:[#allocation2 + $0x2b]]
        %v927 = vstv %s926
        %v928 = vadd.f32 %v927, %v221
        %v930 = vlaneseq
        %v931 = vshrl.u32 %v930, 7
        %v932 = vsub.s32 0, %v931
        %v933 = vrot.slane %v928, %v932
        %v935 = vmul.f32 %v933, %v454
        %v936 = vmul.f32 %v933, %v455
        %v937 = vadd.f32 %v833, %v935
        %v938 = vadd.f32 %v834, %v936
        %s939 = sld [smem:[#allocation2 + $0x37]]
        %v940 = vstv %s939
        %v941 = vadd.f32 %v940, %v221
        %v943 = vlaneseq
        %v944 = vshrl.u32 %v943, 7
        %v945 = vsub.s32 0, %v944
        %v946 = vrot.slane %v941, %v945
        %v948 = vmul.f32 %v946, %v454
        %v949 = vmul.f32 %v946, %v455
        %v950 = vadd.f32 %v846, %v948
        %v951 = vadd.f32 %v847, %v949
        %s952 = sld [smem:[#allocation2 + $0x43]]
        %v953 = vstv %s952
        %v954 = vadd.f32 %v953, %v221
        %v956 = vlaneseq
        %v957 = vshrl.u32 %v956, 7
        %v958 = vsub.s32 0, %v957
        %v959 = vrot.slane %v954, %v958
        %v961 = vmul.f32 %v959, %v454
        %v962 = vmul.f32 %v959, %v455
        %v963 = vadd.f32 %v859, %v961
        %v964 = vadd.f32 %v860, %v962
        %s965 = sld [smem:[#allocation2 + $0x4f]]
        %v966 = vstv %s965
        %v967 = vadd.f32 %v966, %v221
        %v969 = vlaneseq
        %v970 = vshrl.u32 %v969, 7
        %v971 = vsub.s32 0, %v970
        %v972 = vrot.slane %v967, %v971
        %v974 = vmul.f32 %v972, %v454
        %v975 = vmul.f32 %v972, %v455
        %v976 = vadd.f32 %v872, %v974
        %v977 = vadd.f32 %v873, %v975
        %s978 = sld [smem:[#allocation2 + $0x5b]]
        %v979 = vstv %s978
        %v980 = vadd.f32 %v979, %v221
        %v982 = vlaneseq
        %v983 = vshrl.u32 %v982, 7
        %v984 = vsub.s32 0, %v983
        %v985 = vrot.slane %v980, %v984
        %v987 = vmul.f32 %v985, %v454
        %v988 = vmul.f32 %v985, %v455
        %v989 = vadd.f32 %v885, %v987
        %v990 = vadd.f32 %v886, %v988
        %s991 = sld [smem:[#allocation2 + $0xa]]
        %v992 = vstv %s991
        %v993 = vadd.f32 %v992, %v221
        %v995 = vlaneseq
        %v996 = vshrl.u32 %v995, 7
        %v997 = vsub.s32 0, %v996
        %v998 = vrot.slane %v993, %v997
        %v1000 = vmul.f32 %v998, %v567
        %v1001 = vmul.f32 %v998, %v568
        %v1002 = vadd.f32 %v898, %v1000
        %v1003 = vadd.f32 %v899, %v1001
        %s1004 = sld [smem:[#allocation2 + $0x16]]
        %v1005 = vstv %s1004
        %v1006 = vadd.f32 %v1005, %v221
        %v1008 = vlaneseq
        %v1009 = vshrl.u32 %v1008, 7
        %v1010 = vsub.s32 0, %v1009
        %v1011 = vrot.slane %v1006, %v1010
        %v1013 = vmul.f32 %v1011, %v567
        %v1014 = vmul.f32 %v1011, %v568
        %v1015 = vadd.f32 %v911, %v1013
        %v1016 = vadd.f32 %v912, %v1014
        %s1017 = sld [smem:[#allocation2 + $0x22]]
        %v1018 = vstv %s1017
        %v1019 = vadd.f32 %v1018, %v221
        %v1021 = vlaneseq
        %v1022 = vshrl.u32 %v1021, 7
        %v1023 = vsub.s32 0, %v1022
        %v1024 = vrot.slane %v1019, %v1023
        %v1026 = vmul.f32 %v1024, %v567
        %v1027 = vmul.f32 %v1024, %v568
        %v1028 = vadd.f32 %v924, %v1026
        %v1029 = vadd.f32 %v925, %v1027
        %s1030 = sld [smem:[#allocation2 + $0x2e]]
        %v1031 = vstv %s1030
        %v1032 = vadd.f32 %v1031, %v221
        %v1034 = vlaneseq
        %v1035 = vshrl.u32 %v1034, 7
        %v1036 = vsub.s32 0, %v1035
        %v1037 = vrot.slane %v1032, %v1036
        %v1039 = vmul.f32 %v1037, %v567
        %v1040 = vmul.f32 %v1037, %v568
        %v1041 = vadd.f32 %v937, %v1039
        %v1042 = vadd.f32 %v938, %v1040
        %s1043 = sld [smem:[#allocation2 + $0x3a]]
        %v1044 = vstv %s1043
        %v1045 = vadd.f32 %v1044, %v221
        %v1047 = vlaneseq
        %v1048 = vshrl.u32 %v1047, 7
        %v1049 = vsub.s32 0, %v1048
        %v1050 = vrot.slane %v1045, %v1049
        %v1052 = vmul.f32 %v1050, %v567
        %v1053 = vmul.f32 %v1050, %v568
        %v1054 = vadd.f32 %v950, %v1052
        %v1055 = vadd.f32 %v951, %v1053
        %s1056 = sld [smem:[#allocation2 + $0x46]]
        %v1057 = vstv %s1056
        %v1058 = vadd.f32 %v1057, %v221
        %v1060 = vlaneseq
        %v1061 = vshrl.u32 %v1060, 7
        %v1062 = vsub.s32 0, %v1061
        %v1063 = vrot.slane %v1058, %v1062
        %v1065 = vmul.f32 %v1063, %v567
        %v1066 = vmul.f32 %v1063, %v568
        %v1067 = vadd.f32 %v963, %v1065
        %v1068 = vadd.f32 %v964, %v1066
        %s1069 = sld [smem:[#allocation2 + $0x52]]
        %v1070 = vstv %s1069
        %v1071 = vadd.f32 %v1070, %v221
        %v1073 = vlaneseq
        %v1074 = vshrl.u32 %v1073, 7
        %v1075 = vsub.s32 0, %v1074
        %v1076 = vrot.slane %v1071, %v1075
        %v1078 = vmul.f32 %v1076, %v567
        %v1079 = vmul.f32 %v1076, %v568
        %v1080 = vadd.f32 %v976, %v1078
        %v1081 = vadd.f32 %v977, %v1079
        %s1082 = sld [smem:[#allocation2 + $0x5e]]
        %v1083 = vstv %s1082
        %v1084 = vadd.f32 %v1083, %v221
        %v1086 = vlaneseq
        %v1087 = vshrl.u32 %v1086, 7
        %v1088 = vsub.s32 0, %v1087
        %v1089 = vrot.slane %v1084, %v1088
        %v1091 = vmul.f32 %v1089, %v567
        %v1092 = vmul.f32 %v1089, %v568
        %v1093 = vadd.f32 %v989, %v1091
        %v1094 = vadd.f32 %v990, %v1092
        %1095 = vrot.lane.b32.xlu0 %v226, 127
        %v1096 = vpop.permute.xlu0 %1095
        %1097 = vrot.lane.b32.xlu0 %v227, 127
        %v1098 = vpop.permute.xlu0 %1097
        %v1099 = vsel %vm225, 1, 0
        %vm1100 = vcmp.eq.s32.totalorder %v1099, 1
        %v1101 = vsel %vm1100, %v1096, 0.0
        %v1102 = vsel %vm1100, %v1098, 0.0
        %s1103 = sld [smem:[#allocation2 + $0x2]]
        %v1104 = vstv %s1103
        %v1105 = vadd.f32 %v1104, %v221
        %v1107 = vlaneseq
        %v1108 = vshrl.u32 %v1107, 7
        %v1109 = vsub.s32 0, %v1108
        %v1110 = vrot.slane %v1105, %v1109
        %v1112 = vmul.f32 %v1110, %v1101
        %v1113 = vmul.f32 %v1110, %v1102
        %v1114 = vadd.f32 %v1002, %v1112
        %v1115 = vadd.f32 %v1003, %v1113
        %s1116 = sld [smem:[#allocation2 + $0xe]]
        %v1117 = vstv %s1116
        %v1118 = vadd.f32 %v1117, %v221
        %v1120 = vlaneseq
        %v1121 = vshrl.u32 %v1120, 7
        %v1122 = vsub.s32 0, %v1121
        %v1123 = vrot.slane %v1118, %v1122
        %v1125 = vmul.f32 %v1123, %v1101
        %v1126 = vmul.f32 %v1123, %v1102
        %v1127 = vadd.f32 %v1015, %v1125
        %v1128 = vadd.f32 %v1016, %v1126
        %s1129 = sld [smem:[#allocation2 + $0x1a]]
        %v1130 = vstv %s1129
        %v1131 = vadd.f32 %v1130, %v221
        %v1133 = vlaneseq
        %v1134 = vshrl.u32 %v1133, 7
        %v1135 = vsub.s32 0, %v1134
        %v1136 = vrot.slane %v1131, %v1135
        %v1138 = vmul.f32 %v1136, %v1101
        %v1139 = vmul.f32 %v1136, %v1102
        %v1140 = vadd.f32 %v1028, %v1138
        %v1141 = vadd.f32 %v1029, %v1139
        %s1142 = sld [smem:[#allocation2 + $0x26]]
        %v1143 = vstv %s1142
        %v1144 = vadd.f32 %v1143, %v221
        %v1146 = vlaneseq
        %v1147 = vshrl.u32 %v1146, 7
        %v1148 = vsub.s32 0, %v1147
        %v1149 = vrot.slane %v1144, %v1148
        %v1151 = vmul.f32 %v1149, %v1101
        %v1152 = vmul.f32 %v1149, %v1102
        %v1153 = vadd.f32 %v1041, %v1151
        %v1154 = vadd.f32 %v1042, %v1152
        %s1155 = sld [smem:[#allocation2 + $0x32]]
        %v1156 = vstv %s1155
        %v1157 = vadd.f32 %v1156, %v221
        %v1159 = vlaneseq
        %v1160 = vshrl.u32 %v1159, 7
        %v1161 = vsub.s32 0, %v1160
        %v1162 = vrot.slane %v1157, %v1161
        %v1164 = vmul.f32 %v1162, %v1101
        %v1165 = vmul.f32 %v1162, %v1102
        %v1166 = vadd.f32 %v1054, %v1164
        %v1167 = vadd.f32 %v1055, %v1165
        %s1168 = sld [smem:[#allocation2 + $0x3e]]
        %v1169 = vstv %s1168
        %v1170 = vadd.f32 %v1169, %v221
        %v1172 = vlaneseq
        %v1173 = vshrl.u32 %v1172, 7
        %v1174 = vsub.s32 0, %v1173
        %v1175 = vrot.slane %v1170, %v1174
        %v1177 = vmul.f32 %v1175, %v1101
        %v1178 = vmul.f32 %v1175, %v1102
        %v1179 = vadd.f32 %v1067, %v1177
        %v1180 = vadd.f32 %v1068, %v1178
        %s1181 = sld [smem:[#allocation2 + $0x4a]]
        %v1182 = vstv %s1181
        %v1183 = vadd.f32 %v1182, %v221
        %v1185 = vlaneseq
        %v1186 = vshrl.u32 %v1185, 7
        %v1187 = vsub.s32 0, %v1186
        %v1188 = vrot.slane %v1183, %v1187
        %v1190 = vmul.f32 %v1188, %v1101
        %v1191 = vmul.f32 %v1188, %v1102
        %v1192 = vadd.f32 %v1080, %v1190
        %v1193 = vadd.f32 %v1081, %v1191
        %s1194 = sld [smem:[#allocation2 + $0x56]]
        %v1195 = vstv %s1194
        %v1196 = vadd.f32 %v1195, %v221
        %v1198 = vlaneseq
        %v1199 = vshrl.u32 %v1198, 7
        %v1200 = vsub.s32 0, %v1199
        %v1201 = vrot.slane %v1196, %v1200
        %v1203 = vmul.f32 %v1201, %v1101
        %v1204 = vmul.f32 %v1201, %v1102
        %v1205 = vadd.f32 %v1093, %v1203
        %v1206 = vadd.f32 %v1094, %v1204
        %1207 = vrot.lane.b32.xlu0 %v341, 127
        %v1208 = vpop.permute.xlu0 %1207
        %1209 = vrot.lane.b32.xlu0 %v342, 127
        %v1210 = vpop.permute.xlu0 %1209
        %v1211 = vsel %vm1100, %v1208, 0.0
        %v1212 = vsel %vm1100, %v1210, 0.0
        %s1213 = sld [smem:[#allocation2 + $0x5]]
        %v1214 = vstv %s1213
        %v1215 = vadd.f32 %v1214, %v221
        %v1217 = vlaneseq
        %v1218 = vshrl.u32 %v1217, 7
        %v1219 = vsub.s32 0, %v1218
        %v1220 = vrot.slane %v1215, %v1219
        %v1222 = vmul.f32 %v1220, %v1211
        %v1223 = vmul.f32 %v1220, %v1212
        %v1224 = vadd.f32 %v1114, %v1222
        %v1225 = vadd.f32 %v1115, %v1223
        %s1226 = sld [smem:[#allocation2 + $0x11]]
        %v1227 = vstv %s1226
        %v1228 = vadd.f32 %v1227, %v221
        %v1230 = vlaneseq
        %v1231 = vshrl.u32 %v1230, 7
        %v1232 = vsub.s32 0, %v1231
        %v1233 = vrot.slane %v1228, %v1232
        %v1235 = vmul.f32 %v1233, %v1211
        %v1236 = vmul.f32 %v1233, %v1212
        %v1237 = vadd.f32 %v1127, %v1235
        %v1238 = vadd.f32 %v1128, %v1236
        %s1239 = sld [smem:[#allocation2 + $0x1d]]
        %v1240 = vstv %s1239
        %v1241 = vadd.f32 %v1240, %v221
        %v1243 = vlaneseq
        %v1244 = vshrl.u32 %v1243, 7
        %v1245 = vsub.s32 0, %v1244
        %v1246 = vrot.slane %v1241, %v1245
        %v1248 = vmul.f32 %v1246, %v1211
        %v1249 = vmul.f32 %v1246, %v1212
        %v1250 = vadd.f32 %v1140, %v1248
        %v1251 = vadd.f32 %v1141, %v1249
        %s1252 = sld [smem:[#allocation2 + $0x29]]
        %v1253 = vstv %s1252
        %v1254 = vadd.f32 %v1253, %v221
        %v1256 = vlaneseq
        %v1257 = vshrl.u32 %v1256, 7
        %v1258 = vsub.s32 0, %v1257
        %v1259 = vrot.slane %v1254, %v1258
        %v1261 = vmul.f32 %v1259, %v1211
        %v1262 = vmul.f32 %v1259, %v1212
        %v1263 = vadd.f32 %v1153, %v1261
        %v1264 = vadd.f32 %v1154, %v1262
        %s1265 = sld [smem:[#allocation2 + $0x35]]
        %v1266 = vstv %s1265
        %v1267 = vadd.f32 %v1266, %v221
        %v1269 = vlaneseq
        %v1270 = vshrl.u32 %v1269, 7
        %v1271 = vsub.s32 0, %v1270
        %v1272 = vrot.slane %v1267, %v1271
        %v1274 = vmul.f32 %v1272, %v1211
        %v1275 = vmul.f32 %v1272, %v1212
        %v1276 = vadd.f32 %v1166, %v1274
        %v1277 = vadd.f32 %v1167, %v1275
        %s1278 = sld [smem:[#allocation2 + $0x41]]
        %v1279 = vstv %s1278
        %v1280 = vadd.f32 %v1279, %v221
        %v1282 = vlaneseq
        %v1283 = vshrl.u32 %v1282, 7
        %v1284 = vsub.s32 0, %v1283
        %v1285 = vrot.slane %v1280, %v1284
        %v1287 = vmul.f32 %v1285, %v1211
        %v1288 = vmul.f32 %v1285, %v1212
        %v1289 = vadd.f32 %v1179, %v1287
        %v1290 = vadd.f32 %v1180, %v1288
        %s1291 = sld [smem:[#allocation2 + $0x4d]]
        %v1292 = vstv %s1291
        %v1293 = vadd.f32 %v1292, %v221
        %v1295 = vlaneseq
        %v1296 = vshrl.u32 %v1295, 7
        %v1297 = vsub.s32 0, %v1296
        %v1298 = vrot.slane %v1293, %v1297
        %v1300 = vmul.f32 %v1298, %v1211
        %v1301 = vmul.f32 %v1298, %v1212
        %v1302 = vadd.f32 %v1192, %v1300
        %v1303 = vadd.f32 %v1193, %v1301
        %s1304 = sld [smem:[#allocation2 + $0x59]]
        %v1305 = vstv %s1304
        %v1306 = vadd.f32 %v1305, %v221
        %v1308 = vlaneseq
        %v1309 = vshrl.u32 %v1308, 7
        %v1310 = vsub.s32 0, %v1309
        %v1311 = vrot.slane %v1306, %v1310
        %v1313 = vmul.f32 %v1311, %v1211
        %v1314 = vmul.f32 %v1311, %v1212
        %v1315 = vadd.f32 %v1205, %v1313
        %v1316 = vadd.f32 %v1206, %v1314
        %1317 = vrot.lane.b32.xlu0 %v454, 127
        %v1318 = vpop.permute.xlu0 %1317
        %1319 = vrot.lane.b32.xlu0 %v455, 127
        %v1320 = vpop.permute.xlu0 %1319
        %v1321 = vsel %vm1100, %v1318, 0.0
        %v1322 = vsel %vm1100, %v1320, 0.0
        %s1323 = sld [smem:[#allocation2 + $0x8]]
        %v1324 = vstv %s1323
        %v1325 = vadd.f32 %v1324, %v221
        %v1327 = vlaneseq
        %v1328 = vshrl.u32 %v1327, 7
        %v1329 = vsub.s32 0, %v1328
        %v1330 = vrot.slane %v1325, %v1329
        %v1332 = vmul.f32 %v1330, %v1321
        %v1333 = vmul.f32 %v1330, %v1322
        %v1334 = vadd.f32 %v1224, %v1332
        %v1335 = vadd.f32 %v1225, %v1333
        %s1336 = sld [smem:[#allocation2 + $0x14]]
        %v1337 = vstv %s1336
        %v1338 = vadd.f32 %v1337, %v221
        %v1340 = vlaneseq
        %v1341 = vshrl.u32 %v1340, 7
        %v1342 = vsub.s32 0, %v1341
        %v1343 = vrot.slane %v1338, %v1342
        %v1345 = vmul.f32 %v1343, %v1321
        %v1346 = vmul.f32 %v1343, %v1322
        %v1347 = vadd.f32 %v1237, %v1345
        %v1348 = vadd.f32 %v1238, %v1346
        %s1349 = sld [smem:[#allocation2 + $0x20]]
        %v1350 = vstv %s1349
        %v1351 = vadd.f32 %v1350, %v221
        %v1353 = vlaneseq
        %v1354 = vshrl.u32 %v1353, 7
        %v1355 = vsub.s32 0, %v1354
        %v1356 = vrot.slane %v1351, %v1355
        %v1358 = vmul.f32 %v1356, %v1321
        %v1359 = vmul.f32 %v1356, %v1322
        %v1360 = vadd.f32 %v1250, %v1358
        %v1361 = vadd.f32 %v1251, %v1359
        %s1362 = sld [smem:[#allocation2 + $0x2c]]
        %v1363 = vstv %s1362
        %v1364 = vadd.f32 %v1363, %v221
        %v1366 = vlaneseq
        %v1367 = vshrl.u32 %v1366, 7
        %v1368 = vsub.s32 0, %v1367
        %v1369 = vrot.slane %v1364, %v1368
        %v1371 = vmul.f32 %v1369, %v1321
        %v1372 = vmul.f32 %v1369, %v1322
        %v1373 = vadd.f32 %v1263, %v1371
        %v1374 = vadd.f32 %v1264, %v1372
        %s1375 = sld [smem:[#allocation2 + $0x38]]
        %v1376 = vstv %s1375
        %v1377 = vadd.f32 %v1376, %v221
        %v1379 = vlaneseq
        %v1380 = vshrl.u32 %v1379, 7
        %v1381 = vsub.s32 0, %v1380
        %v1382 = vrot.slane %v1377, %v1381
        %v1384 = vmul.f32 %v1382, %v1321
        %v1385 = vmul.f32 %v1382, %v1322
        %v1386 = vadd.f32 %v1276, %v1384
        %v1387 = vadd.f32 %v1277, %v1385
        %s1388 = sld [smem:[#allocation2 + $0x44]]
        %v1389 = vstv %s1388
        %v1390 = vadd.f32 %v1389, %v221
        %v1392 = vlaneseq
        %v1393 = vshrl.u32 %v1392, 7
        %v1394 = vsub.s32 0, %v1393
        %v1395 = vrot.slane %v1390, %v1394
        %v1397 = vmul.f32 %v1395, %v1321
        %v1398 = vmul.f32 %v1395, %v1322
        %v1399 = vadd.f32 %v1289, %v1397
        %v1400 = vadd.f32 %v1290, %v1398
        %s1401 = sld [smem:[#allocation2 + $0x50]]
        %v1402 = vstv %s1401
        %v1403 = vadd.f32 %v1402, %v221
        %v1405 = vlaneseq
        %v1406 = vshrl.u32 %v1405, 7
        %v1407 = vsub.s32 0, %v1406
        %v1408 = vrot.slane %v1403, %v1407
        %v1410 = vmul.f32 %v1408, %v1321
        %v1411 = vmul.f32 %v1408, %v1322
        %v1412 = vadd.f32 %v1302, %v1410
        %v1413 = vadd.f32 %v1303, %v1411
        %s1414 = sld [smem:[#allocation2 + $0x5c]]
        %v1415 = vstv %s1414
        %v1416 = vadd.f32 %v1415, %v221
        %v1418 = vlaneseq
        %v1419 = vshrl.u32 %v1418, 7
        %v1420 = vsub.s32 0, %v1419
        %v1421 = vrot.slane %v1416, %v1420
        %v1423 = vmul.f32 %v1421, %v1321
        %v1424 = vmul.f32 %v1421, %v1322
        %v1425 = vadd.f32 %v1315, %v1423
        %v1426 = vadd.f32 %v1316, %v1424
        %1427 = vrot.lane.b32.xlu0 %v567, 127
        %v1428 = vpop.permute.xlu0 %1427
        %1429 = vrot.lane.b32.xlu0 %v568, 127
        %v1430 = vpop.permute.xlu0 %1429
        %v1431 = vsel %vm1100, %v1428, 0.0
        %v1432 = vsel %vm1100, %v1430, 0.0
        %s1433 = sld [smem:[#allocation2 + $0xb]]
        %v1434 = vstv %s1433
        %v1435 = vadd.f32 %v1434, %v221
        %v1437 = vlaneseq
        %v1438 = vshrl.u32 %v1437, 7
        %v1439 = vsub.s32 0, %v1438
        %v1440 = vrot.slane %v1435, %v1439
        %v1442 = vmul.f32 %v1440, %v1431
        %v1443 = vmul.f32 %v1440, %v1432
        %v1444 = vadd.f32 %v1334, %v1442
        %v1445 = vadd.f32 %v1335, %v1443
        %s1446 = sld [smem:[#allocation2 + $0x17]]
        %v1447 = vstv %s1446
        %v1448 = vadd.f32 %v1447, %v221
        %v1450 = vlaneseq
        %v1451 = vshrl.u32 %v1450, 7
        %v1452 = vsub.s32 0, %v1451
        %v1453 = vrot.slane %v1448, %v1452
        %v1455 = vmul.f32 %v1453, %v1431
        %v1456 = vmul.f32 %v1453, %v1432
        %v1457 = vadd.f32 %v1347, %v1455
        %v1458 = vadd.f32 %v1348, %v1456
        %s1459 = sld [smem:[#allocation2 + $0x23]]
        %v1460 = vstv %s1459
        %v1461 = vadd.f32 %v1460, %v221
        %v1463 = vlaneseq
        %v1464 = vshrl.u32 %v1463, 7
        %v1465 = vsub.s32 0, %v1464
        %v1466 = vrot.slane %v1461, %v1465
        %v1468 = vmul.f32 %v1466, %v1431
        %v1469 = vmul.f32 %v1466, %v1432
        %v1470 = vadd.f32 %v1360, %v1468
        %v1471 = vadd.f32 %v1361, %v1469
        %s1472 = sld [smem:[#allocation2 + $0x2f]]
        %v1473 = vstv %s1472
        %v1474 = vadd.f32 %v1473, %v221
        %v1476 = vlaneseq
        %v1477 = vshrl.u32 %v1476, 7
        %v1478 = vsub.s32 0, %v1477
        %v1479 = vrot.slane %v1474, %v1478
        %v1481 = vmul.f32 %v1479, %v1431
        %v1482 = vmul.f32 %v1479, %v1432
        %v1483 = vadd.f32 %v1373, %v1481
        %v1484 = vadd.f32 %v1374, %v1482
        %s1485 = sld [smem:[#allocation2 + $0x3b]]
        %v1486 = vstv %s1485
        %v1487 = vadd.f32 %v1486, %v221
        %v1489 = vlaneseq
        %v1490 = vshrl.u32 %v1489, 7
        %v1491 = vsub.s32 0, %v1490
        %v1492 = vrot.slane %v1487, %v1491
        %v1494 = vmul.f32 %v1492, %v1431
        %v1495 = vmul.f32 %v1492, %v1432
        %v1496 = vadd.f32 %v1386, %v1494
        %v1497 = vadd.f32 %v1387, %v1495
        %s1498 = sld [smem:[#allocation2 + $0x47]]
        %v1499 = vstv %s1498
        %v1500 = vadd.f32 %v1499, %v221
        %v1502 = vlaneseq
        %v1503 = vshrl.u32 %v1502, 7
        %v1504 = vsub.s32 0, %v1503
        %v1505 = vrot.slane %v1500, %v1504
        %v1507 = vmul.f32 %v1505, %v1431
        %v1508 = vmul.f32 %v1505, %v1432
        %v1509 = vadd.f32 %v1399, %v1507
        %v1510 = vadd.f32 %v1400, %v1508
        %s1511 = sld [smem:[#allocation2 + $0x53]]
        %v1512 = vstv %s1511
        %v1513 = vadd.f32 %v1512, %v221
        %v1515 = vlaneseq
        %v1516 = vshrl.u32 %v1515, 7
        %v1517 = vsub.s32 0, %v1516
        %v1518 = vrot.slane %v1513, %v1517
        %v1520 = vmul.f32 %v1518, %v1431
        %v1521 = vmul.f32 %v1518, %v1432
        %v1522 = vadd.f32 %v1412, %v1520
        %v1523 = vadd.f32 %v1413, %v1521
        %s1524 = sld [smem:[#allocation2 + $0x5f]]
        %v1525 = vstv %s1524
        %v1526 = vadd.f32 %v1525, %v221
        %v1528 = vlaneseq
        %v1529 = vshrl.u32 %v1528, 7
        %v1530 = vsub.s32 0, %v1529
        %v1531 = vrot.slane %v1526, %v1530
        %v1533 = vmul.f32 %v1531, %v1431
        %v1534 = vmul.f32 %v1531, %v1432
        %v1535 = vadd.f32 %v1425, %v1533
        %v1536 = vadd.f32 %v1426, %v1534
        %1537 = vst [vmem:[%s218] sm:$0xff] %v1444
        %1538 = vst [vmem:[%s218 + $0x8] sm:$0xff] %v1445
        %s1539 = scalar_lea.vmem %s218, 16 [#allocation7]
        %1540 = vst [vmem:[%s1539] sm:$0xff] %v1457
        %1541 = vst [vmem:[%s1539 + $0x8] sm:$0xff] %v1458
        %s1542 = scalar_lea.vmem %s218, 32 [#allocation7]
        %1543 = vst [vmem:[%s1542] sm:$0xff] %v1470
        %1544 = vst [vmem:[%s1542 + $0x8] sm:$0xff] %v1471
        %s1545 = scalar_lea.vmem %s218, 48 [#allocation7]
        %1546 = vst [vmem:[%s1545] sm:$0xff] %v1483
        %1547 = vst [vmem:[%s1545 + $0x8] sm:$0xff] %v1484
        %s1548 = scalar_lea.vmem %s218, 64 [#allocation7]
        %1549 = vst [vmem:[%s1548] sm:$0xff] %v1496
        %1550 = vst [vmem:[%s1548 + $0x8] sm:$0xff] %v1497
        %s1551 = scalar_lea.vmem %s218, 80 [#allocation7]
        %1552 = vst [vmem:[%s1551] sm:$0xff] %v1509
        %1553 = vst [vmem:[%s1551 + $0x8] sm:$0xff] %v1510
        %s1554 = scalar_lea.vmem %s218, 96 [#allocation7]
        %1555 = vst [vmem:[%s1554] sm:$0xff] %v1522
        %1556 = vst [vmem:[%s1554 + $0x8] sm:$0xff] %v1523
        %s1557 = scalar_lea.vmem %s218, 112 [#allocation7]
        %1558 = vst [vmem:[%s1557] sm:$0xff] %v1535
        %1559 = vst [vmem:[%s1557 + $0x8] sm:$0xff] %v1536
        %s1560 = sand.u32 %s113, 1
        %s1561 = scalar_lea.sflag [#allocation4], %s1560
        %s1562 = sand.u32 %s113, 1
        %s1563 = smul.addr %s1562, 128
        %s1564 = scalar_lea.vmem [#allocation7], %s1563
        // Predicated region
        $region41: #{tpu_custom_call.1} parent=31 // pred_check
          %p1565 = pneg %p123
        $region42: #{tpu_custom_call.1} parent=31 // pred_check_branch
          %1567 = sbr.rel (%p1565) target = $region44
        $region43: #{tpu_custom_call.1} parent=31 // pred_region
          %s1568 = smul.u32 2, %s26
          %s1570 = ssub.s32 2048, 2048
          %1571 = vsyncadd %s1561, %s1570
          %s1572 = smul.addr %s25, 16
          %s1573 = sadd.s32 %s1568, %s1572
          %s1574 = smul.addr %s1573, 128
          %s1575 = scalar_lea.hbm %s3, %s1574
          %s1576 = sshll.u32 %s1564, 4
          %s1577 = int_to_ptr.vmem [resolvable:$true] %s1576
          %1582 = dma.vmem_to_hbm [thread:$0]  %s1577, 2048, %s1575, %s1561, 128, 128, 8
        $region44: #{tpu_custom_call.1} parent=31 // pred_fallthru
          _
      $region32: #{tpu_custom_call.1} parent=5 // pred_fallthru
        _
      %p1583 = scmp.le.s32.totalorder 2, %s16
      // Predicated region
      $region45: #{tpu_custom_call.1} parent=5 // pred_check
        %p1584 = pneg %p1583
      $region46: #{tpu_custom_call.1} parent=5 // pred_check_branch
        %1586 = sbr.rel (%p1584) target = $region48
      $region47: #{tpu_custom_call.1} parent=5 // pred_region
        %s1587 = ssub.s32 %s16, 2
        // Predicated region
        $region49: #{tpu_custom_call.1} parent=47 // pred_check
          %p1588 = pneg %p129
        $region50: #{tpu_custom_call.1} parent=47 // pred_check_branch
          %1590 = sbr.rel (%p1588) target = $region52
        $region51: #{tpu_custom_call.1} parent=47 // pred_region
          %s1591 = sand.u32 %s114, 1
          %s1592 = scalar_lea.sflag [#allocation4], %s1591
          %s1593 = sand.u32 %s114, 1
          %s1594 = smul.addr %s1593, 128
          %s1595 = scalar_lea.vmem [#allocation7], %s1594
          %1596 = dma.done %s1592, 2048
        $region52: #{tpu_custom_call.1} parent=47 // pred_fallthru
          _
      $region48: #{tpu_custom_call.1} parent=5 // pred_fallthru
        _
    $region6: #{tpu_custom_call.1} parent=1 // loop_footer
      %s20 = sadd.s32 1, %s16
    $region7: #{tpu_custom_call.1} parent=1 // loop_footer_branch
      %15 = sbr.rel target = $region3
    $region8: #{tpu_custom_call.1} parent=1 // loop_exit
      _
    %1597 = vsyncpa [#allocation3], 1
    %s1598 = scalar_lea.sflag [#allocation3], 1
    %1599 = vsyncpa %s1598, 1
    %1600 = vsyncpa [#allocation4], 1
    %s1601 = scalar_lea.sflag [#allocation4], 1
    %1602 = vsyncpa %s1601, 1
    %1603 = vsyncpa [#allocation5], 1
    %s1604 = scalar_lea.sflag [#allocation5], 1
    %1605 = vsyncpa %s1604, 1

</llo_original>
